<compile_context>
chip_gen: v6e
topology: v6e:2x2x1
jax: 0.10.0
libtpu: 0.0.40
codegen_flags: <defaults>
</compile_context>

<pallas_src>
import jax
import jax.numpy as jnp
from jax import lax
from jax.experimental import pallas as pl
from jax.experimental.pallas import tpu as pltpu


def _round_up(a: int, b: int) -> int:
    return ((a + b - 1) // b) * b


def _make_vicreg_kernel(n: int, d_true: int, d_pad: int,
                        sim_coeff: float, cov_coeff: float):
    n_f = float(n)
    inv_n = 1.0 / n_f
    inv_nm1 = 1.0 / (n_f - 1.0)
    inv_d = 1.0 / float(d_true)
    dn = (((0,), (0,)), ((), ()))  # contract the leading (batch/sublane) axis

    def kernel(x_ref, y_ref, loss_ref, gx_ref, gy_ref, mom_ref):
        k = pl.program_id(0)

        @pl.when(k == 0)
        def _init():
            gx_ref[...] = jnp.zeros_like(gx_ref)
            gy_ref[...] = jnp.zeros_like(gy_ref)
            mom_ref[...] = jnp.zeros_like(mom_ref)

        x = x_ref[...]
        y = y_ref[...]
        xf = x.astype(jnp.float32)
        yf = y.astype(jnp.float32)
        diff = xf - yf

        # Per-feature running moments, rows of the (8, d_pad) scratch:
        #   0: sum x   1: sum y   2: sum (x-y)^2
        # (sum x^2 / sum y^2 come from diag(Gram) in the epilogue.)
        mom_ref[0:1, :] += jnp.sum(xf, axis=0, keepdims=True)
        mom_ref[1:2, :] += jnp.sum(yf, axis=0, keepdims=True)
        mom_ref[2:3, :] += jnp.sum(diff * diff, axis=0, keepdims=True)

        # Gram accumulation on the MXU (contraction depth = tm), f32 accumulate.
        gx_ref[...] += lax.dot_general(x, x, dn, preferred_element_type=jnp.float32)
        gy_ref[...] += lax.dot_general(y, y, dn, preferred_element_type=jnp.float32)

        @pl.when(k == pl.num_programs(0) - 1)
        def _epilogue():
            gx = gx_ref[...]
            gy = gy_ref[...]
            sum_x = mom_ref[0:1, :]
            sum_y = mom_ref[1:2, :]
            sum_d2 = mom_ref[2:3, :]

            mean_x = sum_x * inv_n
            mean_y = sum_y * inv_n

            # diag(G)[j] == sum_i v[i,j]^2  ->  unbiased variance == diag(cov).
            row = lax.broadcasted_iota(jnp.int32, (d_pad, d_pad), 0)
            col = lax.broadcasted_iota(jnp.int32, (d_pad, d_pad), 1)
            eye = row == col
            diag_gx = jnp.sum(jnp.where(eye, gx, 0.0), axis=0, keepdims=True)
            diag_gy = jnp.sum(jnp.where(eye, gy, 0.0), axis=0, keepdims=True)
            var_x = (diag_gx - n_f * mean_x * mean_x) * inv_nm1
            var_y = (diag_gy - n_f * mean_y * mean_y) * inv_nm1

            # Invariance term: mean_i ||x_i - y_i||^2.
            repr_loss = jnp.sum(sum_d2) * inv_n

            # Variance hinge; zero-padded feature columns are masked out.
            feat_mask = lax.broadcasted_iota(jnp.int32, (1, d_pad), 1) < d_true
            std_x = jnp.sqrt(var_x + 1e-4)
            std_y = jnp.sqrt(var_y + 1e-4)
            hinge_x = jnp.where(feat_mask, jnp.maximum(1.0 - std_x, 0.0), 0.0)
            hinge_y = jnp.where(feat_mask, jnp.maximum(1.0 - std_y, 0.0), 0.0)
            std_loss = 0.5 * inv_d * (jnp.sum(hinge_x) + jnp.sum(hinge_y))

            # Covariance: cov = (G - n * outer(mean, mean)) / (n - 1).
            # Build outer(mean) on the MXU: contract an 8-row broadcast of the
            # mean -> 8 * outer(mean); n/8 is exact in FP so no extra rounding.
            bx = jnp.broadcast_to(mean_x, (8, d_pad))
            by = jnp.broadcast_to(mean_y, (8, d_pad))
            outer_x8 = lax.dot_general(bx, bx, dn, preferred_element_type=jnp.float32)
            outer_y8 = lax.dot_general(by, by, dn, preferred_element_type=jnp.float32)
            cov_x = (gx - (n_f * 0.125) * outer_x8) * inv_nm1
            cov_y = (gy - (n_f * 0.125) * outer_y8) * inv_nm1
            # Off-diagonal sum of squares: diag(cov) == var, so no eye mask on
            # the squared matrices is needed.
            cov_loss = inv_d * (
                jnp.sum(cov_x * cov_x) - jnp.sum(var_x * var_x)
                + jnp.sum(cov_y * cov_y) - jnp.sum(var_y * var_y))

            # NOTE: the reference module hard-codes `50 * std_loss`.
            loss = sim_coeff * repr_loss + 50.0 * std_loss + cov_coeff * cov_loss
            loss_ref[...] = jnp.broadcast_to(loss.astype(jnp.float32), loss_ref.shape)

    return kernel


def vicreg_loss(x, y, sim_coeff=25.0, std_coeff=25.0, cov_coeff=1.0,
                *, tm=512, input_dtype=jnp.float32):
    """Pallas implementation of VICReg.forward. (std_coeff kept for API parity;
    the reference module never uses it — the 50x factor is hard-coded.)"""
    assert x.shape == y.shape and x.ndim == 2, "x, y must both be (batch, emb_dim)"
    m, d = x.shape
    assert m >= 2, "VICReg needs batch >= 2 (unbiased variance)"

    # Feature axis padded to a multiple of 128 -> lane-dense tiles / MXU cols.
    d_pad = _round_up(max(d, 128), 128)
    bytes_per = jnp.dtype(input_dtype).itemsize

    # Fixed VMEM footprint: Gram accumulators + moments + output block.
    fixed = 2 * d_pad * d_pad * 4 + 8 * d_pad * 4 + 2 * 8 * 128 * 4
    # Working-set budget that is comfortable on every chip (v7x VMEM = 64 MiB).
    budget = 48 << 20
    per_row = 2 * 2 * d_pad * bytes_per        # x + y tiles, double buffered
    if budget > fixed:
        tm_cap = max(8, ((budget - fixed) // per_row) // 8 * 8)
    else:
        tm_cap = 8
    # Batch tile (reduction axis): as large as requested / allowed, multiple of 8.
    tm_eff = max(8, _round_up(min(tm, tm_cap, _round_up(m, 8)), 8))
    m_pad = _round_up(m, tm_eff)

    x = x.astype(input_dtype)
    y = y.astype(input_dtype)
    if m_pad != m or d_pad != d:
        pad = ((0, m_pad - m), (0, d_pad - d))
        x = jnp.pad(x, pad)
        y = jnp.pad(y, pad)

    vmem_needed = fixed + 2 * 2 * tm_eff * d_pad * bytes_per
    vmem_limit = min(max(int(vmem_needed * 1.25) + (2 << 20), 16 << 20), 56 << 20)

    kernel = _make_vicreg_kernel(m, d, d_pad, float(sim_coeff), float(cov_coeff))

    out = pl.pallas_call(
        kernel,
        out_shape=jax.ShapeDtypeStruct((8, 128), jnp.float32),
        grid_spec=pltpu.PrefetchScalarGridSpec(
            num_scalar_prefetch=0,
            grid=(m_pad // tm_eff,),
            in_specs=[pl.BlockSpec((tm_eff, d_pad), lambda k: (k, 0)),
                      pl.BlockSpec((tm_eff, d_pad), lambda k: (k, 0))],
            out_specs=pl.BlockSpec((8, 128), lambda k: (0, 0)),
            scratch_shapes=[pltpu.VMEM((d_pad, d_pad), jnp.float32),
                            pltpu.VMEM((d_pad, d_pad), jnp.float32),
                            pltpu.VMEM((8, d_pad), jnp.float32)],
        ),
        compiler_params=pltpu.CompilerParams(
            dimension_semantics=("arbitrary",),
            vmem_limit_bytes=vmem_limit,
        ),
    )(x, y)
    return out[0, 0]


def _reference(x, y, sim_coeff=25.0, std_coeff=25.0, cov_coeff=1.0):
    x = x.astype(jnp.float32)
    y = y.astype(jnp.float32)
    n, d = x.shape
    repr_loss = jnp.mean(jnp.sum((x - y) ** 2, axis=1))
    xc = x - x.mean(axis=0)
    yc = y - y.mean(axis=0)
    std_x = jnp.sqrt(jnp.var(xc, axis=0, ddof=1) + 1e-4)
    std_y = jnp.sqrt(jnp.var(yc, axis=0, ddof=1) + 1e-4)
    std_loss = (jnp.mean(jnp.maximum(1.0 - std_x, 0.0)) / 2
                + jnp.mean(jnp.maximum(1.0 - std_y, 0.0)) / 2)
    cov_x = xc.T @ xc / (n - 1)
    cov_y = yc.T @ yc / (n - 1)

    def off_diag_sq(c):
        return jnp.sum(c * c) - jnp.sum(jnp.diag(c) ** 2)

    cov_loss = off_diag_sq(cov_x) / d + off_diag_sq(cov_y) / d
    return sim_coeff * repr_loss + 50.0 * std_loss + cov_coeff * cov_loss


if __name__ == "__main__":
    key = jax.random.PRNGKey(0)
    kx, ky = jax.random.split(key)
    batch, emb = 256, 96   # small; exercises feature padding (96 -> 128)
    x = jax.random.normal(kx, (batch, emb), dtype=jnp.float32)
    y = x + 0.1 * jax.random.normal(ky, (batch, emb), dtype=jnp.float32)

    # tm=128 so the test also exercises multi-step accumulation over the grid.
    out = vicreg_loss(x, y, sim_coeff=25.0, std_coeff=25.0, cov_coeff=1.0, tm=128)
    out = jax.block_until_ready(out)

    ref = jax.block_until_ready(_reference(x, y, 25.0, 25.0, 1.0))
    assert jnp.allclose(out, ref, rtol=1e-4, atol=1e-3), (out, ref)

    print("KERNEL_OK")
</pallas_src>

<mosaic_0001>
module attributes {stable_mosaic.version = 11 : i64} {
  func.func @kernel(%arg0: i32, %arg1: memref<128x128xf32, #tpu.memory_space<vmem>>, %arg2: memref<128x128xf32, #tpu.memory_space<vmem>>, %arg3: memref<8x128xf32, #tpu.memory_space<vmem>>, %arg4: memref<128x128xf32, #tpu.memory_space<vmem>>, %arg5: memref<128x128xf32, #tpu.memory_space<vmem>>, %arg6: memref<8x128xf32, #tpu.memory_space<vmem>>) attributes {dimension_semantics = [#tpu.dimension_semantics<arbitrary>], iteration_bounds = array<i64: 2>, scalar_prefetch = 0 : i64, scratch_operands = 3 : i64, tpu.core_type = #tpu.core_type<tc>, window_params = [{transform_indices = @transform_0, window_bounds = array<i64: 128, 128>}, {transform_indices = @transform_1, window_bounds = array<i64: 128, 128>}, {pipeline_mode = #tpu.pipeline_mode<synchronous>, transform_indices = @transform_2, window_bounds = array<i64: 8, 128>}]} {
    %c0_i32 = arith.constant 0 : i32
    %0 = arith.cmpi eq, %arg0, %c0_i32 : i32
    %1 = arith.extui %0 : i1 to i32
    %c0_i32_0 = arith.constant 0 : i32
    %2 = arith.cmpi ne, %1, %c0_i32_0 : i32
    scf.if %2 {
      %cst_27 = arith.constant 0.000000e+00 : f32
      %33 = vector.broadcast %cst_27 : f32 to vector<128x128xf32>
      %c0_28 = arith.constant 0 : index
      %c0_29 = arith.constant 0 : index
      %34 = vector.load %arg4[%c0_28, %c0_29] : memref<128x128xf32, #tpu.memory_space<vmem>>, vector<128x128xf32>
      tpu.vector_store %arg4[%c0_28, %c0_29], %33 {strides = array<i32>} : memref<128x128xf32, #tpu.memory_space<vmem>>, vector<128x128xf32>,
      %cst_30 = arith.constant 0.000000e+00 : f32
      %35 = vector.broadcast %cst_30 : f32 to vector<128x128xf32>
      %c0_31 = arith.constant 0 : index
      %c0_32 = arith.constant 0 : index
      %36 = vector.load %arg5[%c0_31, %c0_32] : memref<128x128xf32, #tpu.memory_space<vmem>>, vector<128x128xf32>
      tpu.vector_store %arg5[%c0_31, %c0_32], %35 {strides = array<i32>} : memref<128x128xf32, #tpu.memory_space<vmem>>, vector<128x128xf32>,
      %cst_33 = arith.constant 0.000000e+00 : f32
      %37 = vector.broadcast %cst_33 : f32 to vector<8x128xf32>
      %c0_34 = arith.constant 0 : index
      %c0_35 = arith.constant 0 : index
      %38 = vector.load %arg6[%c0_34, %c0_35] : memref<8x128xf32, #tpu.memory_space<vmem>>, vector<8x128xf32>
      tpu.vector_store %arg6[%c0_34, %c0_35], %37 {strides = array<i32>} : memref<8x128xf32, #tpu.memory_space<vmem>>, vector<8x128xf32>,
    } else {
    }
    %c0 = arith.constant 0 : index
    %c0_1 = arith.constant 0 : index
    %3 = vector.load %arg1[%c0, %c0_1] : memref<128x128xf32, #tpu.memory_space<vmem>>, vector<128x128xf32>
    %c0_2 = arith.constant 0 : index
    %c0_3 = arith.constant 0 : index
    %4 = vector.load %arg2[%c0_2, %c0_3] : memref<128x128xf32, #tpu.memory_space<vmem>>, vector<128x128xf32>
    %5 = arith.subf %3, %4 : vector<128x128xf32>
    %c0_4 = arith.constant 0 : index
    %c0_5 = arith.constant 0 : index
    %6 = vector.load %arg6[%c0_4, %c0_5] : memref<8x128xf32, #tpu.memory_space<vmem>>, vector<1x128xf32>
    %cst = arith.constant dense<0.000000e+00> : vector<128xf32>
    %7 = vector.multi_reduction <add>, %3, %cst [0] : vector<128x128xf32> to vector<128xf32>
    %8 = vector.shape_cast %7 : vector<128xf32> to vector<1x128xf32>
    %9 = arith.addf %6, %8 : vector<1x128xf32>
    %c0_6 = arith.constant 0 : index
    %c0_7 = arith.constant 0 : index
    %10 = vector.load %arg6[%c0_6, %c0_7] : memref<8x128xf32, #tpu.memory_space<vmem>>, vector<1x128xf32>
    tpu.vector_store %arg6[%c0_6, %c0_7], %9 {strides = array<i32>} : memref<8x128xf32, #tpu.memory_space<vmem>>, vector<1x128xf32>,
    %c1 = arith.constant 1 : index
    %c0_8 = arith.constant 0 : index
    %11 = vector.load %arg6[%c1, %c0_8] : memref<8x128xf32, #tpu.memory_space<vmem>>, vector<1x128xf32>
    %cst_9 = arith.constant dense<0.000000e+00> : vector<128xf32>
    %12 = vector.multi_reduction <add>, %4, %cst_9 [0] : vector<128x128xf32> to vector<128xf32>
    %13 = vector.shape_cast %12 : vector<128xf32> to vector<1x128xf32>
    %14 = arith.addf %11, %13 : vector<1x128xf32>
    %c1_10 = arith.constant 1 : index
    %c0_11 = arith.constant 0 : index
    %15 = vector.load %arg6[%c1_10, %c0_11] : memref<8x128xf32, #tpu.memory_space<vmem>>, vector<1x128xf32>
    tpu.vector_store %arg6[%c1_10, %c0_11], %14 {strides = array<i32>} : memref<8x128xf32, #tpu.memory_space<vmem>>, vector<1x128xf32>,
    %c2 = arith.constant 2 : index
    %c0_12 = arith.constant 0 : index
    %16 = vector.load %arg6[%c2, %c0_12] : memref<8x128xf32, #tpu.memory_space<vmem>>, vector<1x128xf32>
    %17 = arith.mulf %5, %5 : vector<128x128xf32>
    %cst_13 = arith.constant dense<0.000000e+00> : vector<128xf32>
    %18 = vector.multi_reduction <add>, %17, %cst_13 [0] : vector<128x128xf32> to vector<128xf32>
    %19 = vector.shape_cast %18 : vector<128xf32> to vector<1x128xf32>
    %20 = arith.addf %16, %19 : vector<1x128xf32>
    %c2_14 = arith.constant 2 : index
    %c0_15 = arith.constant 0 : index
    %21 = vector.load %arg6[%c2_14, %c0_15] : memref<8x128xf32, #tpu.memory_space<vmem>>, vector<1x128xf32>
    tpu.vector_store %arg6[%c2_14, %c0_15], %20 {strides = array<i32>} : memref<8x128xf32, #tpu.memory_space<vmem>>, vector<1x128xf32>,
    %c0_16 = arith.constant 0 : index
    %c0_17 = arith.constant 0 : index
    %22 = vector.load %arg4[%c0_16, %c0_17] : memref<128x128xf32, #tpu.memory_space<vmem>>, vector<128x128xf32>
    %cst_18 = arith.constant dense<0.000000e+00> : vector<128x128xf32>
    %23 = tpu.matmul %3, %3, %cst_18 {dimension_numbers = #tpu.dot_dimension_numbers<[0], [0], [1], [1], [0, 1, 1, 1], [], []>} : vector<128x128xf32>, vector<128x128xf32>, vector<128x128xf32> -> vector<128x128xf32>
    %24 = arith.addf %22, %23 : vector<128x128xf32>
    %c0_19 = arith.constant 0 : index
    %c0_20 = arith.constant 0 : index
    %25 = vector.load %arg4[%c0_19, %c0_20] : memref<128x128xf32, #tpu.memory_space<vmem>>, vector<128x128xf32>
    tpu.vector_store %arg4[%c0_19, %c0_20], %24 {strides = array<i32>} : memref<128x128xf32, #tpu.memory_space<vmem>>, vector<128x128xf32>,
    %c0_21 = arith.constant 0 : index
    %c0_22 = arith.constant 0 : index
    %26 = vector.load %arg5[%c0_21, %c0_22] : memref<128x128xf32, #tpu.memory_space<vmem>>, vector<128x128xf32>
    %cst_23 = arith.constant dense<0.000000e+00> : vector<128x128xf32>
    %27 = tpu.matmul %4, %4, %cst_23 {dimension_numbers = #tpu.dot_dimension_numbers<[0], [0], [1], [1], [0, 1, 1, 1], [], []>} : vector<128x128xf32>, vector<128x128xf32>, vector<128x128xf32> -> vector<128x128xf32>
    %28 = arith.addf %26, %27 : vector<128x128xf32>
    %c0_24 = arith.constant 0 : index
    %c0_25 = arith.constant 0 : index
    %29 = vector.load %arg5[%c0_24, %c0_25] : memref<128x128xf32, #tpu.memory_space<vmem>>, vector<128x128xf32>
    tpu.vector_store %arg5[%c0_24, %c0_25], %28 {strides = array<i32>} : memref<128x128xf32, #tpu.memory_space<vmem>>, vector<128x128xf32>,
    %c1_i32 = arith.constant 1 : i32
    %30 = arith.cmpi eq, %arg0, %c1_i32 : i32
    %31 = arith.extui %30 : i1 to i32
    %c0_i32_26 = arith.constant 0 : i32
    %32 = arith.cmpi ne, %31, %c0_i32_26 : i32
    scf.if %32 {
      %c0_27 = arith.constant 0 : index
      %c0_28 = arith.constant 0 : index
      %33 = vector.load %arg4[%c0_27, %c0_28] : memref<128x128xf32, #tpu.memory_space<vmem>>, vector<128x128xf32>
      %c0_29 = arith.constant 0 : index
      %c0_30 = arith.constant 0 : index
      %34 = vector.load %arg5[%c0_29, %c0_30] : memref<128x128xf32, #tpu.memory_space<vmem>>, vector<128x128xf32>
      %c0_31 = arith.constant 0 : index
      %c0_32 = arith.constant 0 : index
      %35 = vector.load %arg6[%c0_31, %c0_32] : memref<8x128xf32, #tpu.memory_space<vmem>>, vector<1x128xf32>
      %c1_33 = arith.constant 1 : index
      %c0_34 = arith.constant 0 : index
      %36 = vector.load %arg6[%c1_33, %c0_34] : memref<8x128xf32, #tpu.memory_space<vmem>>, vector<1x128xf32>
      %c2_35 = arith.constant 2 : index
      %c0_36 = arith.constant 0 : index
      %37 = vector.load %arg6[%c2_35, %c0_36] : memref<8x128xf32, #tpu.memory_space<vmem>>, vector<1x128xf32>
      %cst_37 = arith.constant 3.906250e-03 : f32
      %38 = vector.broadcast %cst_37 : f32 to vector<1x128xf32>
      %39 = arith.mulf %35, %38 : vector<1x128xf32>
      %cst_38 = arith.constant 3.906250e-03 : f32
      %40 = vector.broadcast %cst_38 : f32 to vector<1x128xf32>
      %41 = arith.mulf %36, %40 : vector<1x128xf32>
      %42 = tpu.iota {dimensions = array<i32: 0>} : vector<128x128xi32>
      %43 = tpu.iota {dimensions = array<i32: 1>} : vector<128x128xi32>
      %44 = arith.cmpi eq, %42, %43 : vector<128x128xi32>
      %cst_39 = arith.constant 0.000000e+00 : f32
      %45 = vector.broadcast %cst_39 : f32 to vector<128x128xf32>
      %46 = arith.select %44, %33, %45 : vector<128x128xi1>, vector<128x128xf32>
      %cst_40 = arith.constant dense<0.000000e+00> : vector<128xf32>
      %47 = vector.multi_reduction <add>, %46, %cst_40 [0] : vector<128x128xf32> to vector<128xf32>
      %48 = vector.shape_cast %47 : vector<128xf32> to vector<1x128xf32>
      %cst_41 = arith.constant 0.000000e+00 : f32
      %49 = vector.broadcast %cst_41 : f32 to vector<128x128xf32>
      %50 = arith.select %44, %34, %49 : vector<128x128xi1>, vector<128x128xf32>
      %cst_42 = arith.constant dense<0.000000e+00> : vector<128xf32>
      %51 = vector.multi_reduction <add>, %50, %cst_42 [0] : vector<128x128xf32> to vector<128xf32>
      %52 = vector.shape_cast %51 : vector<128xf32> to vector<1x128xf32>
      %cst_43 = arith.constant 2.560000e+02 : f32
      %53 = vector.broadcast %cst_43 : f32 to vector<1x128xf32>
      %54 = arith.mulf %53, %39 : vector<1x128xf32>
      %55 = arith.mulf %54, %39 : vector<1x128xf32>
      %56 = arith.subf %48, %55 : vector<1x128xf32>
      %cst_44 = arith.constant 0.00392156886 : f32
      %57 = vector.broadcast %cst_44 : f32 to vector<1x128xf32>
      %58 = arith.mulf %56, %57 : vector<1x128xf32>
      %cst_45 = arith.constant 2.560000e+02 : f32
      %59 = vector.broadcast %cst_45 : f32 to vector<1x128xf32>
      %60 = arith.mulf %59, %41 : vector<1x128xf32>
      %61 = arith.mulf %60, %41 : vector<1x128xf32>
      %62 = arith.subf %52, %61 : vector<1x128xf32>
      %cst_46 = arith.constant 0.00392156886 : f32
      %63 = vector.broadcast %cst_46 : f32 to vector<1x128xf32>
      %64 = arith.mulf %62, %63 : vector<1x128xf32>
      %65 = vector.shape_cast %37 : vector<1x128xf32> to vector<1x1x128xf32>
      %cst_47 = arith.constant dense<0.000000e+00> : vector<1xf32>
      %66 = vector.multi_reduction <add>, %65, %cst_47 [1, 2] : vector<1x1x128xf32> to vector<1xf32>
      %67 = vector.shape_cast %66 : vector<1xf32> to vector<1x1x1xf32>
      %68 = vector.extract %67[0, 0, 0] : f32 from vector<1x1x1xf32>
      %cst_48 = arith.constant 3.906250e-03 : f32
      %69 = arith.mulf %68, %cst_48 : f32
      %70 = tpu.iota {dimensions = array<i32: 1>} : vector<1x128xi32>
      %c96_i32 = arith.constant 96 : i32
      %71 = vector.broadcast %c96_i32 : i32 to vector<1x128xi32>
      %72 = arith.cmpi slt, %70, %71 : vector<1x128xi32>
      %cst_49 = arith.constant 9.99999974E-5 : f32
      %73 = vector.broadcast %cst_49 : f32 to vector<1x128xf32>
      %74 = arith.addf %58, %73 : vector<1x128xf32>
      %75 = math.sqrt %74 : vector<1x128xf32>
      %cst_50 = arith.constant 9.99999974E-5 : f32
      %76 = vector.broadcast %cst_50 : f32 to vector<1x128xf32>
      %77 = arith.addf %64, %76 : vector<1x128xf32>
      %78 = math.sqrt %77 : vector<1x128xf32>
      %cst_51 = arith.constant 1.000000e+00 : f32
      %79 = vector.broadcast %cst_51 : f32 to vector<1x128xf32>
      %80 = arith.subf %79, %75 : vector<1x128xf32>
      %cst_52 = arith.constant 0.000000e+00 : f32
      %81 = vector.broadcast %cst_52 : f32 to vector<1x128xf32>
      %82 = arith.maximumf %80, %81 : vector<1x128xf32>
      %cst_53 = arith.constant 0.000000e+00 : f32
      %83 = vector.broadcast %cst_53 : f32 to vector<1x128xf32>
      %84 = arith.select %72, %82, %83 : vector<1x128xi1>, vector<1x128xf32>
      %cst_54 = arith.constant 1.000000e+00 : f32
      %85 = vector.broadcast %cst_54 : f32 to vector<1x128xf32>
      %86 = arith.subf %85, %78 : vector<1x128xf32>
      %cst_55 = arith.constant 0.000000e+00 : f32
      %87 = vector.broadcast %cst_55 : f32 to vector<1x128xf32>
      %88 = arith.maximumf %86, %87 : vector<1x128xf32>
      %cst_56 = arith.constant 0.000000e+00 : f32
      %89 = vector.broadcast %cst_56 : f32 to vector<1x128xf32>
      %90 = arith.select %72, %88, %89 : vector<1x128xi1>, vector<1x128xf32>
      %91 = vector.shape_cast %84 : vector<1x128xf32> to vector<1x1x128xf32>
      %cst_57 = arith.constant dense<0.000000e+00> : vector<1xf32>
      %92 = vector.multi_reduction <add>, %91, %cst_57 [1, 2] : vector<1x1x128xf32> to vector<1xf32>
      %93 = vector.shape_cast %92 : vector<1xf32> to vector<1x1x1xf32>
      %94 = vector.extract %93[0, 0, 0] : f32 from vector<1x1x1xf32>
      %95 = vector.shape_cast %90 : vector<1x128xf32> to vector<1x1x128xf32>
      %cst_58 = arith.constant dense<0.000000e+00> : vector<1xf32>
      %96 = vector.multi_reduction <add>, %95, %cst_58 [1, 2] : vector<1x1x128xf32> to vector<1xf32>
      %97 = vector.shape_cast %96 : vector<1xf32> to vector<1x1x1xf32>
      %98 = vector.extract %97[0, 0, 0] : f32 from vector<1x1x1xf32>
      %99 = arith.addf %94, %98 : f32
      %cst_59 = arith.constant 0.00520833349 : f32
      %100 = arith.mulf %cst_59, %99 : f32
      %101 = vector.shape_cast %39 : vector<1x128xf32> to vector<1x128xf32>
      %102 = vector.broadcast %101 : vector<1x128xf32> to vector<8x128xf32>
      %103 = vector.shape_cast %41 : vector<1x128xf32> to vector<1x128xf32>
      %104 = vector.broadcast %103 : vector<1x128xf32> to vector<8x128xf32>
      %cst_60 = arith.constant dense<0.000000e+00> : vector<128x128xf32>
      %105 = tpu.matmul %102, %102, %cst_60 {dimension_numbers = #tpu.dot_dimension_numbers<[0], [0], [1], [1], [0, 1, 1, 1], [], []>} : vector<8x128xf32>, vector<8x128xf32>, vector<128x128xf32> -> vector<128x128xf32>
      %cst_61 = arith.constant dense<0.000000e+00> : vector<128x128xf32>
      %106 = tpu.matmul %104, %104, %cst_61 {dimension_numbers = #tpu.dot_dimension_numbers<[0], [0], [1], [1], [0, 1, 1, 1], [], []>} : vector<8x128xf32>, vector<8x128xf32>, vector<128x128xf32> -> vector<128x128xf32>
      %cst_62 = arith.constant 3.200000e+01 : f32
      %107 = vector.broadcast %cst_62 : f32 to vector<128x128xf32>
      %108 = arith.mulf %107, %105 : vector<128x128xf32>
      %109 = arith.subf %33, %108 : vector<128x128xf32>
      %cst_63 = arith.constant 0.00392156886 : f32
      %110 = vector.broadcast %cst_63 : f32 to vector<128x128xf32>
      %111 = arith.mulf %109, %110 : vector<128x128xf32>
      %cst_64 = arith.constant 3.200000e+01 : f32
      %112 = vector.broadcast %cst_64 : f32 to vector<128x128xf32>
      %113 = arith.mulf %112, %106 : vector<128x128xf32>
      %114 = arith.subf %34, %113 : vector<128x128xf32>
      %cst_65 = arith.constant 0.00392156886 : f32
      %115 = vector.broadcast %cst_65 : f32 to vector<128x128xf32>
      %116 = arith.mulf %114, %115 : vector<128x128xf32>
      %117 = arith.mulf %111, %111 : vector<128x128xf32>
      %118 = vector.shape_cast %117 : vector<128x128xf32> to vector<1x128x128xf32>
      %cst_66 = arith.constant dense<0.000000e+00> : vector<1xf32>
      %119 = vector.multi_reduction <add>, %118, %cst_66 [1, 2] : vector<1x128x128xf32> to vector<1xf32>
      %120 = vector.shape_cast %119 : vector<1xf32> to vector<1x1x1xf32>
      %121 = vector.extract %120[0, 0, 0] : f32 from vector<1x1x1xf32>
      %122 = arith.mulf %58, %58 : vector<1x128xf32>
      %123 = vector.shape_cast %122 : vector<1x128xf32> to vector<1x1x128xf32>
      %cst_67 = arith.constant dense<0.000000e+00> : vector<1xf32>
      %124 = vector.multi_reduction <add>, %123, %cst_67 [1, 2] : vector<1x1x128xf32> to vector<1xf32>
      %125 = vector.shape_cast %124 : vector<1xf32> to vector<1x1x1xf32>
      %126 = vector.extract %125[0, 0, 0] : f32 from vector<1x1x1xf32>
      %127 = arith.subf %121, %126 : f32
      %128 = arith.mulf %116, %116 : vector<128x128xf32>
      %129 = vector.shape_cast %128 : vector<128x128xf32> to vector<1x128x128xf32>
      %cst_68 = arith.constant dense<0.000000e+00> : vector<1xf32>
      %130 = vector.multi_reduction <add>, %129, %cst_68 [1, 2] : vector<1x128x128xf32> to vector<1xf32>
      %131 = vector.shape_cast %130 : vector<1xf32> to vector<1x1x1xf32>
      %132 = vector.extract %131[0, 0, 0] : f32 from vector<1x1x1xf32>
      %133 = arith.addf %127, %132 : f32
      %134 = arith.mulf %64, %64 : vector<1x128xf32>
      %135 = vector.shape_cast %134 : vector<1x128xf32> to vector<1x1x128xf32>
      %cst_69 = arith.constant dense<0.000000e+00> : vector<1xf32>
      %136 = vector.multi_reduction <add>, %135, %cst_69 [1, 2] : vector<1x1x128xf32> to vector<1xf32>
      %137 = vector.shape_cast %136 : vector<1xf32> to vector<1x1x1xf32>
      %138 = vector.extract %137[0, 0, 0] : f32 from vector<1x1x1xf32>
      %139 = arith.subf %133, %138 : f32
      %cst_70 = arith.constant 0.010416667 : f32
      %140 = arith.mulf %cst_70, %139 : f32
      %cst_71 = arith.constant 2.500000e+01 : f32
      %141 = arith.mulf %cst_71, %69 : f32
      %cst_72 = arith.constant 5.000000e+01 : f32
      %142 = arith.mulf %cst_72, %100 : f32
      %143 = arith.addf %141, %142 : f32
      %cst_73 = arith.constant 1.000000e+00 : f32
      %144 = arith.mulf %cst_73, %140 : f32
      %145 = arith.addf %143, %144 : f32
      %146 = vector.broadcast %145 : f32 to vector<8x128xf32>
      %c0_74 = arith.constant 0 : index
      %c0_75 = arith.constant 0 : index
      %147 = vector.load %arg3[%c0_74, %c0_75] : memref<8x128xf32, #tpu.memory_space<vmem>>, vector<8x128xf32>
      tpu.vector_store %arg3[%c0_74, %c0_75], %146 {strides = array<i32>} : memref<8x128xf32, #tpu.memory_space<vmem>>, vector<8x128xf32>,
    } else {
    }
    return
  }
  func.func @transform_0(%arg0: i32) -> (i32, i32) {
    %c0_i32 = arith.constant 0 : i32
    %c0_i32_0 = arith.constant 0 : i32
    return %arg0, %c0_i32 : i32, i32
  }
  func.func @transform_1(%arg0: i32) -> (i32, i32) {
    %c0_i32 = arith.constant 0 : i32
    %c0_i32_0 = arith.constant 0 : i32
    return %arg0, %c0_i32 : i32, i32
  }
  func.func @transform_2(%arg0: i32) -> (i32, i32) {
    %c0_i32 = arith.constant 0 : i32
    %c0_i32_0 = arith.constant 0 : i32
    %c0_i32_1 = arith.constant 0 : i32
    return %c0_i32, %c0_i32_0 : i32, i32
  }
}

</mosaic_0001>

<llo_original>
// kernel: tpu_custom_call.1
$region0: #{tpu_custom_call.1}
  #allocation0 [shape = 'u32[]', space=smem, size = 0x4, offset = 0x4, fixed_abs, tag = 'smem constant byte address 0x4 - core index']
  #allocation1 [shape = 'u32[144,128]{1,0:T(1,128)}', space=vmem, size = 0x12000, scoped, tag = 'internal scratch']
  #allocation2 [shape = 'f32[128,128]{1,0:T(8,128)}', space=vmem, size = 0x10000, scoped, tag = 'scratch operand']
  #allocation3 [shape = 'f32[128,128]{1,0:T(8,128)}', space=vmem, size = 0x10000, scoped, tag = 'scratch operand']
  #allocation4 [shape = 'f32[8,128]{1,0:T(8,128)}', space=vmem, size = 0x1000, scoped, tag = 'scratch operand']
  %s0 = inlined_call_operand.hbm [shape: f32[256,128], index: 0, kind: input, shape index: {}]
  %s1 = inlined_call_operand.hbm [shape: f32[256,128], index: 1, kind: input, shape index: {}]
  %s2 = inlined_call_operand.hbm [shape: f32[8,128], index: 2, kind: output, shape index: {}]
  %s3 = sld [smem:[#allocation0]]
  $region57: #{tpu_custom_call.1} parent=0
    _
  %s5 = ssub.s32 1, %s3
  %s6 = scalar_select 0, %s5, %s3
  $region1: #{tpu_custom_call.1} parent=0
    #allocation5 [shape = 'u8[131072]{0}', space=vmem, size = 0x20000, scoped, tag = 'input window, operand 0']
    #allocation6 [shape = 's32[2]{0}', space=sflag, size = 0x8, scoped, tag = 'scoped memory for tpu_custom_call.1']
    #allocation7 [shape = 's32[2]{0}', space=sflag, size = 0x8, scoped, tag = 'scoped memory for tpu_custom_call.1']
    #allocation8 [shape = 'u8[131072]{0}', space=vmem, size = 0x20000, scoped, tag = 'input window, operand 1']
    #allocation9 [shape = 's32[2]{0}', space=sflag, size = 0x8, scoped, tag = 'scoped memory for tpu_custom_call.1']
    #allocation10 [shape = 'u8[4096]{0}', space=vmem, size = 0x1000, scoped, tag = 'output window, operand 0, single buffered']
    %7 = vsyncpa [#allocation6], 0
    %s8 = scalar_lea.sflag [#allocation6], 1
    %9 = vsyncpa %s8, 0
    %10 = vsyncpa [#allocation9], 0
    %s11 = scalar_lea.sflag [#allocation9], 1
    %12 = vsyncpa %s11, 0
    %13 = vsyncpa [#allocation7], 0
    loop: start=0, step=1, limit=4
    $region2: #{tpu_custom_call.1} parent=1 // loop_pre_header
      _
    $region3: #{tpu_custom_call.1} parent=1 // loop_header
      %s15 = sphi 0, %s19
      %p16 = scmp.ge.s32.totalorder %s15, 4
      %s25 = sphi 0, %s27
      %s28 = sphi 0, %s25
      %s29 = sphi 0, %s28
      %s45 = sphi 0, %s29
      %s51 = sphi 0, %s53
      %s54 = sphi 0, %s51
      %s55 = sphi 0, %s54
      %s71 = sphi 0, %s55
      %s75 = sphi 0, %s75
      %s77 = sphi 0, %s75
      %s78 = sphi 0, %s77
      %s92 = sphi 0, %s78
    $region4: #{tpu_custom_call.1} parent=1 // loop_header_branch
      %18 = sbr.rel (%p16) target = $region8
    $region5: #{tpu_custom_call.1} parent=1 // loop_body
      %s20 = ssub.s32 %s15, 1
      %s21 = ssub.s32 %s15, 2
      %s22 = sadd.s32 %s15, 1
      %s23 = ssub.s32 %s15, %s22
      %p24 = scmp.eq.s32.totalorder %s23, 0
      %s26 = sadd.s32 %s25, 1
      %s27 = scalar_select %p24, %s25, %s26
      %p30 = pneg %p24
      %p31 = scmp.eq.s32.totalorder %s15, 1
      %p32 = por %p30, %p31
      %p33 = scmp.ne.s32.totalorder %s25, %s28
      %p34 = scmp.eq.s32.totalorder %s15, 0
      %p35 = por %p33, %p34
      %p36 = scmp.ne.s32.totalorder %s25, %s28
      %p37 = scmp.eq.s32.totalorder %s20, 1
      %p38 = por %p36, %p37
      %p39 = scmp.ne.s32.totalorder %s28, %s29
      %p40 = scmp.eq.s32.totalorder %s20, 0
      %p41 = por %p39, %p40
      %p42 = scmp.ne.s32.totalorder %s28, %s29
      %p43 = scmp.eq.s32.totalorder %s21, 1
      %p44 = por %p42, %p43
      %p46 = scmp.ne.s32.totalorder %s29, %s45
      %p47 = scmp.eq.s32.totalorder %s21, 0
      %p48 = por %p46, %p47
      %s49 = ssub.s32 %s15, %s22
      %p50 = scmp.eq.s32.totalorder %s49, 0
      %s52 = sadd.s32 %s51, 1
      %s53 = scalar_select %p50, %s51, %s52
      %p56 = pneg %p50
      %p57 = scmp.eq.s32.totalorder %s15, 1
      %p58 = por %p56, %p57
      %p59 = scmp.ne.s32.totalorder %s51, %s54
      %p60 = scmp.eq.s32.totalorder %s15, 0
      %p61 = por %p59, %p60
      %p62 = scmp.ne.s32.totalorder %s51, %s54
      %p63 = scmp.eq.s32.totalorder %s20, 1
      %p64 = por %p62, %p63
      %p65 = scmp.ne.s32.totalorder %s54, %s55
      %p66 = scmp.eq.s32.totalorder %s20, 0
      %p67 = por %p65, %p66
      %p68 = scmp.ne.s32.totalorder %s54, %s55
      %p69 = scmp.eq.s32.totalorder %s21, 1
      %p70 = por %p68, %p69
      %p72 = scmp.ne.s32.totalorder %s55, %s71
      %p73 = scmp.eq.s32.totalorder %s21, 0
      %p74 = por %p72, %p73
      %s76 = sadd.s32 %s75, 1
      %p79 = scmp.eq.s32.totalorder %s15, 1
      %p80 = scmp.ne.s32.totalorder %s75, %s77
      %p81 = scmp.eq.s32.totalorder %s15, 0
      %p82 = por %p80, %p81
      %p83 = scmp.ne.s32.totalorder %s75, %s77
      %p84 = scmp.eq.s32.totalorder %s20, 1
      %p85 = por %p83, %p84
      %p86 = scmp.ne.s32.totalorder %s77, %s78
      %p87 = scmp.eq.s32.totalorder %s20, 0
      %p88 = por %p86, %p87
      %p89 = scmp.ne.s32.totalorder %s77, %s78
      %p90 = scmp.eq.s32.totalorder %s21, 1
      %p91 = por %p89, %p90
      %p93 = scmp.ne.s32.totalorder %s78, %s92
      %p94 = scmp.eq.s32.totalorder %s21, 0
      %p95 = por %p93, %p94
      %p96 = scmp.le.s32.totalorder 1, %s15
      %p97 = scmp.lt.s32.totalorder %s15, 3
      %p98 = pnand %p96, %p97
      %p99 = pneg %p98
      // Predicated region
      $region9: #{tpu_custom_call.1} parent=5 // pred_check
        _
      $region10: #{tpu_custom_call.1} parent=5 // pred_check_branch
        %101 = sbr.rel (%p98) target = $region12
      $region11: #{tpu_custom_call.1} parent=5 // pred_region
        %s102 = ssub.s32 %s15, 1
      $region12: #{tpu_custom_call.1} parent=5 // pred_fallthru
        _
      %p103 = scmp.lt.s32.totalorder %s15, 2
      // Predicated region
      $region13: #{tpu_custom_call.1} parent=5 // pred_check
        %p104 = pneg %p103
      $region14: #{tpu_custom_call.1} parent=5 // pred_check_branch
        %106 = sbr.rel (%p104) target = $region16
      $region15: #{tpu_custom_call.1} parent=5 // pred_region
        // Predicated region
        $region17: #{tpu_custom_call.1} parent=15 // pred_check
          %p107 = pneg %p35
        $region18: #{tpu_custom_call.1} parent=15 // pred_check_branch
          %109 = sbr.rel (%p107) target = $region20
        $region19: #{tpu_custom_call.1} parent=15 // pred_region
          %s110 = sand.u32 %s25, 1
          %s111 = scalar_lea.sflag [#allocation6], %s110
          %s112 = sand.u32 %s25, 1
          %s113 = smul.addr %s112, 128
          %s114 = scalar_lea.vmem [#allocation5], %s113
          %s115 = smul.u32 16, %s15
          %s117 = ssub.s32 2048, 2048
          %118 = vsyncadd %s111, %s117
          %s119 = smul.addr %s115, 128
          %s120 = scalar_lea.hbm %s0, %s119
          %s121 = sshll.u32 %s114, 4
          %s122 = int_to_ptr.vmem [resolvable:$true] %s121
          %127 = dma.hbm_to_vmem [thread:$0]  %s120, 2048, %s122, %s111, 128, 128, 8
        $region20: #{tpu_custom_call.1} parent=15 // pred_fallthru
          _
        // Predicated region
        $region21: #{tpu_custom_call.1} parent=15 // pred_check
          %p128 = pneg %p61
        $region22: #{tpu_custom_call.1} parent=15 // pred_check_branch
          %130 = sbr.rel (%p128) target = $region24
        $region23: #{tpu_custom_call.1} parent=15 // pred_region
          %s131 = sand.u32 %s51, 1
          %s132 = scalar_lea.sflag [#allocation9], %s131
          %s133 = sand.u32 %s51, 1
          %s134 = smul.addr %s133, 128
          %s135 = scalar_lea.vmem [#allocation8], %s134
          %s136 = smul.u32 16, %s15
          %s138 = ssub.s32 2048, 2048
          %139 = vsyncadd %s132, %s138
          %s140 = smul.addr %s136, 128
          %s141 = scalar_lea.hbm %s1, %s140
          %s142 = sshll.u32 %s135, 4
          %s143 = int_to_ptr.vmem [resolvable:$true] %s142
          %148 = dma.hbm_to_vmem [thread:$0]  %s141, 2048, %s143, %s132, 128, 128, 8
        $region24: #{tpu_custom_call.1} parent=15 // pred_fallthru
          _
      $region16: #{tpu_custom_call.1} parent=5 // pred_fallthru
        _
      %p149 = scmp.le.s32.totalorder 1, %s15
      %p150 = scmp.lt.s32.totalorder %s15, 3
      %p151 = pnand %p149, %p150
      %p152 = pneg %p151
      // Predicated region
      $region25: #{tpu_custom_call.1} parent=5 // pred_check
        _
      $region26: #{tpu_custom_call.1} parent=5 // pred_check_branch
        %154 = sbr.rel (%p151) target = $region28
      $region27: #{tpu_custom_call.1} parent=5 // pred_region
        %s155 = ssub.s32 %s15, 1
        %s156 = sand.u32 %s28, 1
        %s157 = scalar_lea.sflag [#allocation6], %s156
        %s158 = sand.u32 %s28, 1
        %s159 = smul.addr %s158, 128
        %s160 = scalar_lea.vmem [#allocation5], %s159
        // Predicated region
        $region29: #{tpu_custom_call.1} parent=27 // pred_check
          %p161 = pneg %p41
        $region30: #{tpu_custom_call.1} parent=27 // pred_check_branch
          %163 = sbr.rel (%p161) target = $region32
        $region31: #{tpu_custom_call.1} parent=27 // pred_region
          %164 = dma.done %s157, 2048
        $region32: #{tpu_custom_call.1} parent=27 // pred_fallthru
          _
        %s165 = sand.u32 %s54, 1
        %s166 = scalar_lea.sflag [#allocation9], %s165
        %s167 = sand.u32 %s54, 1
        %s168 = smul.addr %s167, 128
        %s169 = scalar_lea.vmem [#allocation8], %s168
        // Predicated region
        $region33: #{tpu_custom_call.1} parent=27 // pred_check
          %p170 = pneg %p67
        $region34: #{tpu_custom_call.1} parent=27 // pred_check_branch
          %172 = sbr.rel (%p170) target = $region36
        $region35: #{tpu_custom_call.1} parent=27 // pred_region
          %173 = dma.done %s166, 2048
        $region36: #{tpu_custom_call.1} parent=27 // pred_fallthru
          _
        %s174 = sand.u32 %s28, 1
        %s175 = scalar_lea.sflag [#allocation6], %s174
        %s176 = sand.u32 %s28, 1
        %s177 = smul.addr %s176, 128
        %s178 = scalar_lea.vmem [#allocation5], %s177
        %p179 = pneg %p41
        %p180 = pneg %p38
        %s181 = sand.u32 %s54, 1
        %s182 = scalar_lea.sflag [#allocation9], %s181
        %s183 = sand.u32 %s54, 1
        %s184 = smul.addr %s183, 128
        %s185 = scalar_lea.vmem [#allocation8], %s184
        %p186 = pneg %p67
        %p187 = pneg %p64
        %p188 = pneg %p88
        %p189 = pneg %p85
        %s190 = smul.u32 16, %s20
        %s191 = smul.u32 16, %s20
        %p192 = scmp.eq.s32.totalorder %s20, 0
        // Predicated region
        $region37: #{tpu_custom_call.1} parent=27 // pred_check
          %p193 = pneg %p192
        $region38: #{tpu_custom_call.1} parent=27 // pred_check_branch
          %195 = sbr.rel (%p193) target = $region40
        $region39: #{tpu_custom_call.1} parent=27 // pred_region
          %196 = vst [vmem:[#allocation2] sm:$0xff] 0.0
          %197 = vst [vmem:[#allocation2 + $0x8] sm:$0xff] 0.0
          %198 = vst [vmem:[#allocation2 + $0x10] sm:$0xff] 0.0
          %199 = vst [vmem:[#allocation2 + $0x18] sm:$0xff] 0.0
          %200 = vst [vmem:[#allocation2 + $0x20] sm:$0xff] 0.0
          %201 = vst [vmem:[#allocation2 + $0x28] sm:$0xff] 0.0
          %202 = vst [vmem:[#allocation2 + $0x30] sm:$0xff] 0.0
          %203 = vst [vmem:[#allocation2 + $0x38] sm:$0xff] 0.0
          %204 = vst [vmem:[#allocation2 + $0x40] sm:$0xff] 0.0
          %205 = vst [vmem:[#allocation2 + $0x48] sm:$0xff] 0.0
          %206 = vst [vmem:[#allocation2 + $0x50] sm:$0xff] 0.0
          %207 = vst [vmem:[#allocation2 + $0x58] sm:$0xff] 0.0
          %208 = vst [vmem:[#allocation2 + $0x60] sm:$0xff] 0.0
          %209 = vst [vmem:[#allocation2 + $0x68] sm:$0xff] 0.0
          %210 = vst [vmem:[#allocation2 + $0x70] sm:$0xff] 0.0
          %211 = vst [vmem:[#allocation2 + $0x78] sm:$0xff] 0.0
          %212 = vst [vmem:[#allocation3] sm:$0xff] 0.0
          %213 = vst [vmem:[#allocation3 + $0x8] sm:$0xff] 0.0
          %214 = vst [vmem:[#allocation3 + $0x10] sm:$0xff] 0.0
          %215 = vst [vmem:[#allocation3 + $0x18] sm:$0xff] 0.0
          %216 = vst [vmem:[#allocation3 + $0x20] sm:$0xff] 0.0
          %217 = vst [vmem:[#allocation3 + $0x28] sm:$0xff] 0.0
          %218 = vst [vmem:[#allocation3 + $0x30] sm:$0xff] 0.0
          %219 = vst [vmem:[#allocation3 + $0x38] sm:$0xff] 0.0
          %220 = vst [vmem:[#allocation3 + $0x40] sm:$0xff] 0.0
          %221 = vst [vmem:[#allocation3 + $0x48] sm:$0xff] 0.0
          %222 = vst [vmem:[#allocation3 + $0x50] sm:$0xff] 0.0
          %223 = vst [vmem:[#allocation3 + $0x58] sm:$0xff] 0.0
          %224 = vst [vmem:[#allocation3 + $0x60] sm:$0xff] 0.0
          %225 = vst [vmem:[#allocation3 + $0x68] sm:$0xff] 0.0
          %226 = vst [vmem:[#allocation3 + $0x70] sm:$0xff] 0.0
          %227 = vst [vmem:[#allocation3 + $0x78] sm:$0xff] 0.0
          %228 = vst [vmem:[#allocation4] sm:$0xff] 0.0
        $region40: #{tpu_custom_call.1} parent=27 // pred_fallthru
          _
        %v229 = vld [vmem:[%s160] sm:$0xff]
        %v230 = vld [vmem:[%s160 + $0x8] sm:$0xff]
        %v231 = vld [vmem:[%s160 + $0x10] sm:$0xff]
        %v232 = vld [vmem:[%s160 + $0x18] sm:$0xff]
        %v233 = vld [vmem:[%s160 + $0x20] sm:$0xff]
        %v234 = vld [vmem:[%s160 + $0x28] sm:$0xff]
        %v235 = vld [vmem:[%s160 + $0x30] sm:$0xff]
        %v236 = vld [vmem:[%s160 + $0x38] sm:$0xff]
        %v237 = vld [vmem:[%s160 + $0x40] sm:$0xff]
        %v238 = vld [vmem:[%s160 + $0x48] sm:$0xff]
        %v239 = vld [vmem:[%s160 + $0x50] sm:$0xff]
        %v240 = vld [vmem:[%s160 + $0x58] sm:$0xff]
        %v241 = vld [vmem:[%s160 + $0x60] sm:$0xff]
        %v242 = vld [vmem:[%s160 + $0x68] sm:$0xff]
        %v243 = vld [vmem:[%s160 + $0x70] sm:$0xff]
        %v244 = vld [vmem:[%s160 + $0x78] sm:$0xff]
        %v245 = vld [vmem:[%s169] sm:$0xff]
        %v246 = vld [vmem:[%s169 + $0x8] sm:$0xff]
        %v247 = vld [vmem:[%s169 + $0x10] sm:$0xff]
        %v248 = vld [vmem:[%s169 + $0x18] sm:$0xff]
        %v249 = vld [vmem:[%s169 + $0x20] sm:$0xff]
        %v250 = vld [vmem:[%s169 + $0x28] sm:$0xff]
        %v251 = vld [vmem:[%s169 + $0x30] sm:$0xff]
        %v252 = vld [vmem:[%s169 + $0x38] sm:$0xff]
        %v253 = vld [vmem:[%s169 + $0x40] sm:$0xff]
        %v254 = vld [vmem:[%s169 + $0x48] sm:$0xff]
        %v255 = vld [vmem:[%s169 + $0x50] sm:$0xff]
        %v256 = vld [vmem:[%s169 + $0x58] sm:$0xff]
        %v257 = vld [vmem:[%s169 + $0x60] sm:$0xff]
        %v258 = vld [vmem:[%s169 + $0x68] sm:$0xff]
        %v259 = vld [vmem:[%s169 + $0x70] sm:$0xff]
        %v260 = vld [vmem:[%s169 + $0x78] sm:$0xff]
        %v261 = vsub.f32 %v229, %v245
        %v262 = vsub.f32 %v230, %v246
        %v263 = vsub.f32 %v231, %v247
        %v264 = vsub.f32 %v232, %v248
        %v265 = vsub.f32 %v233, %v249
        %v266 = vsub.f32 %v234, %v250
        %v267 = vsub.f32 %v235, %v251
        %v268 = vsub.f32 %v236, %v252
        %v269 = vsub.f32 %v237, %v253
        %v270 = vsub.f32 %v238, %v254
        %v271 = vsub.f32 %v239, %v255
        %v272 = vsub.f32 %v240, %v256
        %v273 = vsub.f32 %v241, %v257
        %v274 = vsub.f32 %v242, %v258
        %v275 = vsub.f32 %v243, %v259
        %v276 = vsub.f32 %v244, %v260
        %v277 = vld [vmem:[#allocation4] sm:$0x1]
        %v278 = vadd.f32 %v229, %v230
        %v279 = vadd.f32 %v278, %v231
        %v280 = vadd.f32 %v279, %v232
        %v281 = vadd.f32 %v280, %v233
        %v282 = vadd.f32 %v281, %v234
        %v283 = vadd.f32 %v282, %v235
        %v284 = vadd.f32 %v283, %v236
        %v285 = vadd.f32 %v284, %v237
        %v286 = vadd.f32 %v285, %v238
        %v287 = vadd.f32 %v286, %v239
        %v288 = vadd.f32 %v287, %v240
        %v289 = vadd.f32 %v288, %v241
        %v290 = vadd.f32 %v289, %v242
        %v291 = vadd.f32 %v290, %v243
        %v292 = vadd.f32 %v291, %v244
        %v293 = vrot.slane %v292, 4
        %v294 = vadd.f32 %v292, %v293
        %v295 = vrot.slane %v294, 2
        %v296 = vadd.f32 %v294, %v295
        %v297 = vrot.slane %v296, 1
        %v298 = vadd.f32 %v296, %v297
        %v299 = vadd.f32 %v277, %v298
        %300 = vst [vmem:[#allocation4] sm:$0x1] %v299
        %v301 = vld [vmem:[#allocation4 + $0x1] sm:$0x1]
        %v302 = vadd.f32 %v245, %v246
        %v303 = vadd.f32 %v302, %v247
        %v304 = vadd.f32 %v303, %v248
        %v305 = vadd.f32 %v304, %v249
        %v306 = vadd.f32 %v305, %v250
        %v307 = vadd.f32 %v306, %v251
        %v308 = vadd.f32 %v307, %v252
        %v309 = vadd.f32 %v308, %v253
        %v310 = vadd.f32 %v309, %v254
        %v311 = vadd.f32 %v310, %v255
        %v312 = vadd.f32 %v311, %v256
        %v313 = vadd.f32 %v312, %v257
        %v314 = vadd.f32 %v313, %v258
        %v315 = vadd.f32 %v314, %v259
        %v316 = vadd.f32 %v315, %v260
        %v317 = vrot.slane %v316, 4
        %v318 = vadd.f32 %v316, %v317
        %v319 = vrot.slane %v318, 2
        %v320 = vadd.f32 %v318, %v319
        %v321 = vrot.slane %v320, 1
        %v322 = vadd.f32 %v320, %v321
        %v323 = vadd.f32 %v301, %v322
        %324 = vst [vmem:[#allocation4 + $0x1] sm:$0x1] %v323
        %v325 = vld [vmem:[#allocation4 + $0x2] sm:$0x1]
        %v326 = vmul.f32 %v261, %v261
        %v327 = vmul.f32 %v262, %v262
        %v328 = vmul.f32 %v263, %v263
        %v329 = vmul.f32 %v264, %v264
        %v330 = vmul.f32 %v265, %v265
        %v331 = vmul.f32 %v266, %v266
        %v332 = vmul.f32 %v267, %v267
        %v333 = vmul.f32 %v268, %v268
        %v334 = vmul.f32 %v269, %v269
        %v335 = vmul.f32 %v270, %v270
        %v336 = vmul.f32 %v271, %v271
        %v337 = vmul.f32 %v272, %v272
        %v338 = vmul.f32 %v273, %v273
        %v339 = vmul.f32 %v274, %v274
        %v340 = vmul.f32 %v275, %v275
        %v341 = vmul.f32 %v276, %v276
        %v342 = vadd.f32 %v326, %v327
        %v343 = vadd.f32 %v342, %v328
        %v344 = vadd.f32 %v343, %v329
        %v345 = vadd.f32 %v344, %v330
        %v346 = vadd.f32 %v345, %v331
        %v347 = vadd.f32 %v346, %v332
        %v348 = vadd.f32 %v347, %v333
        %v349 = vadd.f32 %v348, %v334
        %v350 = vadd.f32 %v349, %v335
        %v351 = vadd.f32 %v350, %v336
        %v352 = vadd.f32 %v351, %v337
        %v353 = vadd.f32 %v352, %v338
        %v354 = vadd.f32 %v353, %v339
        %v355 = vadd.f32 %v354, %v340
        %v356 = vadd.f32 %v355, %v341
        %v357 = vrot.slane %v356, 4
        %v358 = vadd.f32 %v356, %v357
        %v359 = vrot.slane %v358, 2
        %v360 = vadd.f32 %v358, %v359
        %v361 = vrot.slane %v360, 1
        %v362 = vadd.f32 %v360, %v361
        %v363 = vadd.f32 %v325, %v362
        %364 = vst [vmem:[#allocation4 + $0x2] sm:$0x1] %v363
        %v365 = vld [vmem:[#allocation2] sm:$0xff]
        %v366 = vld [vmem:[#allocation2 + $0x8] sm:$0xff]
        %v367 = vld [vmem:[#allocation2 + $0x10] sm:$0xff]
        %v368 = vld [vmem:[#allocation2 + $0x18] sm:$0xff]
        %v369 = vld [vmem:[#allocation2 + $0x20] sm:$0xff]
        %v370 = vld [vmem:[#allocation2 + $0x28] sm:$0xff]
        %v371 = vld [vmem:[#allocation2 + $0x30] sm:$0xff]
        %v372 = vld [vmem:[#allocation2 + $0x38] sm:$0xff]
        %v373 = vld [vmem:[#allocation2 + $0x40] sm:$0xff]
        %v374 = vld [vmem:[#allocation2 + $0x48] sm:$0xff]
        %v375 = vld [vmem:[#allocation2 + $0x50] sm:$0xff]
        %v376 = vld [vmem:[#allocation2 + $0x58] sm:$0xff]
        %v377 = vld [vmem:[#allocation2 + $0x60] sm:$0xff]
        %v378 = vld [vmem:[#allocation2 + $0x68] sm:$0xff]
        %v379 = vld [vmem:[#allocation2 + $0x70] sm:$0xff]
        %v380 = vld [vmem:[#allocation2 + $0x78] sm:$0xff]
        %381 = vxpose.xlu0.b32.start [1/16] %v229, 128
        %382 = vxpose.xlu0.b32.cont [2/16] %v230, 128
        %383 = vxpose.xlu0.b32.cont [3/16] %v231, 128
        %384 = vxpose.xlu0.b32.cont [4/16] %v232, 128
        %385 = vxpose.xlu0.b32.cont [5/16] %v233, 128
        %386 = vxpose.xlu0.b32.cont [6/16] %v234, 128
        %387 = vxpose.xlu0.b32.cont [7/16] %v235, 128
        %388 = vxpose.xlu0.b32.cont [8/16] %v236, 128
        %389 = vxpose.xlu0.b32.cont [9/16] %v237, 128
        %390 = vxpose.xlu0.b32.cont [10/16] %v238, 128
        %391 = vxpose.xlu0.b32.cont [11/16] %v239, 128
        %392 = vxpose.xlu0.b32.cont [12/16] %v240, 128
        %393 = vxpose.xlu0.b32.cont [13/16] %v241, 128
        %394 = vxpose.xlu0.b32.cont [14/16] %v242, 128
        %395 = vxpose.xlu0.b32.cont [15/16] %v243, 128
        %396 = vxpose.xlu0.b32.end [16/16] %v244, 128
        %v397 = vpop.trf.xlu0
        %v398 = vpop.trf.xlu0
        %v399 = vpop.trf.xlu0
        %v400 = vpop.trf.xlu0
        %v401 = vpop.trf.xlu0
        %v402 = vpop.trf.xlu0
        %v403 = vpop.trf.xlu0
        %v404 = vpop.trf.xlu0
        %v405 = vpop.trf.xlu0
        %v406 = vpop.trf.xlu0
        %v407 = vpop.trf.xlu0
        %v408 = vpop.trf.xlu0
        %v409 = vpop.trf.xlu0
        %v410 = vpop.trf.xlu0
        %v411 = vpop.trf.xlu0
        %v412 = vpop.trf.xlu0
        %413 = vmatprep.subr.mxu0 0.0
        %414 = vmatpush1.msra.mxu0 %v244
        %415 = vmatprep.subr.mxu0 0.0
        %416 = vmatpush1.msra.mxu0 %v243
        %417 = vmatprep.subr.mxu0 0.0
        %418 = vmatpush1.msra.mxu0 %v242
        %419 = vmatprep.subr.mxu0 0.0
        %420 = vmatpush1.msra.mxu0 %v241
        %421 = vmatprep.subr.mxu0 0.0
        %422 = vmatpush1.msra.mxu0 %v240
        %423 = vmatprep.subr.mxu0 0.0
        %424 = vmatpush1.msra.mxu0 %v239
        %425 = vmatprep.subr.mxu0 0.0
        %426 = vmatpush1.msra.mxu0 %v238
        %427 = vmatprep.subr.mxu0 0.0
        %428 = vmatpush1.msra.mxu0 %v237
        %429 = vmatprep.subr.mxu0 0.0
        %430 = vmatpush1.msra.mxu0 %v236
        %431 = vmatprep.subr.mxu0 0.0
        %432 = vmatpush1.msra.mxu0 %v235
        %433 = vmatprep.subr.mxu0 0.0
        %434 = vmatpush1.msra.mxu0 %v234
        %435 = vmatprep.subr.mxu0 0.0
        %436 = vmatpush1.msra.mxu0 %v233
        %437 = vmatprep.subr.mxu0 0.0
        %438 = vmatpush1.msra.mxu0 %v232
        %439 = vmatprep.subr.mxu0 0.0
        %440 = vmatpush1.msra.mxu0 %v231
        %441 = vmatprep.subr.mxu0 0.0
        %442 = vmatpush1.msra.mxu0 %v230
        %443 = vmatprep.subr.mxu0 0.0
        %444 = vmatpush1.msra.mxu0 %v229
        %445 = vmatprep.subr.mxu0 0.0
        %446 = vmatpush2.msra.mxu0 0.0
        %447 = vmatprep.subr.mxu0 0.0
        %448 = vmatpush2.msra.mxu0 0.0
        %449 = vmatprep.subr.mxu0 0.0
        %450 = vmatpush2.msra.mxu0 0.0
        %451 = vmatprep.subr.mxu0 0.0
        %452 = vmatpush2.msra.mxu0 0.0
        %453 = vmatprep.subr.mxu0 0.0
        %454 = vmatpush2.msra.mxu0 0.0
        %455 = vmatprep.subr.mxu0 0.0
        %456 = vmatpush2.msra.mxu0 0.0
        %457 = vmatprep.subr.mxu0 0.0
        %458 = vmatpush2.msra.mxu0 0.0
        %459 = vmatprep.subr.mxu0 0.0
        %460 = vmatpush2.msra.mxu0 0.0
        %461 = vmatprep.subr.mxu0 0.0
        %462 = vmatpush2.msra.mxu0 0.0
        %463 = vmatprep.subr.mxu0 0.0
        %464 = vmatpush2.msra.mxu0 0.0
        %465 = vmatprep.subr.mxu0 0.0
        %466 = vmatpush2.msra.mxu0 0.0
        %467 = vmatprep.subr.mxu0 0.0
        %468 = vmatpush2.msra.mxu0 0.0
        %469 = vmatprep.subr.mxu0 0.0
        %470 = vmatpush2.msra.mxu0 0.0
        %471 = vmatprep.subr.mxu0 0.0
        %472 = vmatpush2.msra.mxu0 0.0
        %473 = vmatprep.subr.mxu0 0.0
        %474 = vmatpush2.msra.mxu0 0.0
        %475 = vmatprep.subr.mxu0 0.0
        %476 = vmatpush2.msra.mxu0 0.0
        %477 = vmatprep.mubr.f32.mxu0 0.0
        %478 = vmatmul.mubr.f32.gmra.mxu0 %v397
        %v479 = vpop.f32.mrf.mxu0
        %v480 = vadd.f32 0.0, %v479
        %v481 = vpop.f32.mrf.mxu0
        %482 = vmatprep.mubr.f32.mxu0 0.0
        %483 = vmatmul.mubr.f32.gmra.mxu0 %v398
        %v484 = vpop.f32.mrf.mxu0
        %v485 = vadd.f32 0.0, %v484
        %v486 = vpop.f32.mrf.mxu0
        %487 = vmatprep.mubr.f32.mxu0 0.0
        %488 = vmatmul.mubr.f32.gmra.mxu0 %v399
        %v489 = vpop.f32.mrf.mxu0
        %v490 = vadd.f32 0.0, %v489
        %v491 = vpop.f32.mrf.mxu0
        %492 = vmatprep.mubr.f32.mxu0 0.0
        %493 = vmatmul.mubr.f32.gmra.mxu0 %v400
        %v494 = vpop.f32.mrf.mxu0
        %v495 = vadd.f32 0.0, %v494
        %v496 = vpop.f32.mrf.mxu0
        %497 = vmatprep.mubr.f32.mxu0 0.0
        %498 = vmatmul.mubr.f32.gmra.mxu0 %v401
        %v499 = vpop.f32.mrf.mxu0
        %v500 = vadd.f32 0.0, %v499
        %v501 = vpop.f32.mrf.mxu0
        %502 = vmatprep.mubr.f32.mxu0 0.0
        %503 = vmatmul.mubr.f32.gmra.mxu0 %v402
        %v504 = vpop.f32.mrf.mxu0
        %v505 = vadd.f32 0.0, %v504
        %v506 = vpop.f32.mrf.mxu0
        %507 = vmatprep.mubr.f32.mxu0 0.0
        %508 = vmatmul.mubr.f32.gmra.mxu0 %v403
        %v509 = vpop.f32.mrf.mxu0
        %v510 = vadd.f32 0.0, %v509
        %v511 = vpop.f32.mrf.mxu0
        %512 = vmatprep.mubr.f32.mxu0 0.0
        %513 = vmatmul.mubr.f32.gmra.mxu0 %v404
        %v514 = vpop.f32.mrf.mxu0
        %v515 = vadd.f32 0.0, %v514
        %v516 = vpop.f32.mrf.mxu0
        %517 = vmatprep.mubr.f32.mxu0 0.0
        %518 = vmatmul.mubr.f32.gmra.mxu0 %v405
        %v519 = vpop.f32.mrf.mxu0
        %v520 = vadd.f32 0.0, %v519
        %v521 = vpop.f32.mrf.mxu0
        %522 = vmatprep.mubr.f32.mxu0 0.0
        %523 = vmatmul.mubr.f32.gmra.mxu0 %v406
        %v524 = vpop.f32.mrf.mxu0
        %v525 = vadd.f32 0.0, %v524
        %v526 = vpop.f32.mrf.mxu0
        %527 = vmatprep.mubr.f32.mxu0 0.0
        %528 = vmatmul.mubr.f32.gmra.mxu0 %v407
        %v529 = vpop.f32.mrf.mxu0
        %v530 = vadd.f32 0.0, %v529
        %v531 = vpop.f32.mrf.mxu0
        %532 = vmatprep.mubr.f32.mxu0 0.0
        %533 = vmatmul.mubr.f32.gmra.mxu0 %v408
        %v534 = vpop.f32.mrf.mxu0
        %v535 = vadd.f32 0.0, %v534
        %v536 = vpop.f32.mrf.mxu0
        %537 = vmatprep.mubr.f32.mxu0 0.0
        %538 = vmatmul.mubr.f32.gmra.mxu0 %v409
        %v539 = vpop.f32.mrf.mxu0
        %v540 = vadd.f32 0.0, %v539
        %v541 = vpop.f32.mrf.mxu0
        %542 = vmatprep.mubr.f32.mxu0 0.0
        %543 = vmatmul.mubr.f32.gmra.mxu0 %v410
        %v544 = vpop.f32.mrf.mxu0
        %v545 = vadd.f32 0.0, %v544
        %v546 = vpop.f32.mrf.mxu0
        %547 = vmatprep.mubr.f32.mxu0 0.0
        %548 = vmatmul.mubr.f32.gmra.mxu0 %v411
        %v549 = vpop.f32.mrf.mxu0
        %v550 = vadd.f32 0.0, %v549
        %v551 = vpop.f32.mrf.mxu0
        %552 = vmatprep.mubr.f32.mxu0 0.0
        %553 = vmatmul.mubr.f32.gmra.mxu0 %v412
        %v554 = vpop.f32.mrf.mxu0
        %v555 = vadd.f32 0.0, %v554
        %v556 = vpop.f32.mrf.mxu0
        %557 = vdwg.mxu0
        %v558 = vadd.f32 %v365, %v480
        %v559 = vadd.f32 %v366, %v485
        %v560 = vadd.f32 %v367, %v490
        %v561 = vadd.f32 %v368, %v495
        %v562 = vadd.f32 %v369, %v500
        %v563 = vadd.f32 %v370, %v505
        %v564 = vadd.f32 %v371, %v510
        %v565 = vadd.f32 %v372, %v515
        %v566 = vadd.f32 %v373, %v520
        %v567 = vadd.f32 %v374, %v525
        %v568 = vadd.f32 %v375, %v530
        %v569 = vadd.f32 %v376, %v535
        %v570 = vadd.f32 %v377, %v540
        %v571 = vadd.f32 %v378, %v545
        %v572 = vadd.f32 %v379, %v550
        %v573 = vadd.f32 %v380, %v555
        %574 = vst [vmem:[#allocation2] sm:$0xff] %v558
        %575 = vst [vmem:[#allocation2 + $0x8] sm:$0xff] %v559
        %576 = vst [vmem:[#allocation2 + $0x10] sm:$0xff] %v560
        %577 = vst [vmem:[#allocation2 + $0x18] sm:$0xff] %v561
        %578 = vst [vmem:[#allocation2 + $0x20] sm:$0xff] %v562
        %579 = vst [vmem:[#allocation2 + $0x28] sm:$0xff] %v563
        %580 = vst [vmem:[#allocation2 + $0x30] sm:$0xff] %v564
        %581 = vst [vmem:[#allocation2 + $0x38] sm:$0xff] %v565
        %582 = vst [vmem:[#allocation2 + $0x40] sm:$0xff] %v566
        %583 = vst [vmem:[#allocation2 + $0x48] sm:$0xff] %v567
        %584 = vst [vmem:[#allocation2 + $0x50] sm:$0xff] %v568
        %585 = vst [vmem:[#allocation2 + $0x58] sm:$0xff] %v569
        %586 = vst [vmem:[#allocation2 + $0x60] sm:$0xff] %v570
        %587 = vst [vmem:[#allocation2 + $0x68] sm:$0xff] %v571
        %588 = vst [vmem:[#allocation2 + $0x70] sm:$0xff] %v572
        %589 = vst [vmem:[#allocation2 + $0x78] sm:$0xff] %v573
        %v590 = vld [vmem:[#allocation3] sm:$0xff]
        %v591 = vld [vmem:[#allocation3 + $0x8] sm:$0xff]
        %v592 = vld [vmem:[#allocation3 + $0x10] sm:$0xff]
        %v593 = vld [vmem:[#allocation3 + $0x18] sm:$0xff]
        %v594 = vld [vmem:[#allocation3 + $0x20] sm:$0xff]
        %v595 = vld [vmem:[#allocation3 + $0x28] sm:$0xff]
        %v596 = vld [vmem:[#allocation3 + $0x30] sm:$0xff]
        %v597 = vld [vmem:[#allocation3 + $0x38] sm:$0xff]
        %v598 = vld [vmem:[#allocation3 + $0x40] sm:$0xff]
        %v599 = vld [vmem:[#allocation3 + $0x48] sm:$0xff]
        %v600 = vld [vmem:[#allocation3 + $0x50] sm:$0xff]
        %v601 = vld [vmem:[#allocation3 + $0x58] sm:$0xff]
        %v602 = vld [vmem:[#allocation3 + $0x60] sm:$0xff]
        %v603 = vld [vmem:[#allocation3 + $0x68] sm:$0xff]
        %v604 = vld [vmem:[#allocation3 + $0x70] sm:$0xff]
        %v605 = vld [vmem:[#allocation3 + $0x78] sm:$0xff]
        %606 = vxpose.xlu0.b32.start [1/16] %v245, 128
        %607 = vxpose.xlu0.b32.cont [2/16] %v246, 128
        %608 = vxpose.xlu0.b32.cont [3/16] %v247, 128
        %609 = vxpose.xlu0.b32.cont [4/16] %v248, 128
        %610 = vxpose.xlu0.b32.cont [5/16] %v249, 128
        %611 = vxpose.xlu0.b32.cont [6/16] %v250, 128
        %612 = vxpose.xlu0.b32.cont [7/16] %v251, 128
        %613 = vxpose.xlu0.b32.cont [8/16] %v252, 128
        %614 = vxpose.xlu0.b32.cont [9/16] %v253, 128
        %615 = vxpose.xlu0.b32.cont [10/16] %v254, 128
        %616 = vxpose.xlu0.b32.cont [11/16] %v255, 128
        %617 = vxpose.xlu0.b32.cont [12/16] %v256, 128
        %618 = vxpose.xlu0.b32.cont [13/16] %v257, 128
        %619 = vxpose.xlu0.b32.cont [14/16] %v258, 128
        %620 = vxpose.xlu0.b32.cont [15/16] %v259, 128
        %621 = vxpose.xlu0.b32.end [16/16] %v260, 128
        %v622 = vpop.trf.xlu0
        %v623 = vpop.trf.xlu0
        %v624 = vpop.trf.xlu0
        %v625 = vpop.trf.xlu0
        %v626 = vpop.trf.xlu0
        %v627 = vpop.trf.xlu0
        %v628 = vpop.trf.xlu0
        %v629 = vpop.trf.xlu0
        %v630 = vpop.trf.xlu0
        %v631 = vpop.trf.xlu0
        %v632 = vpop.trf.xlu0
        %v633 = vpop.trf.xlu0
        %v634 = vpop.trf.xlu0
        %v635 = vpop.trf.xlu0
        %v636 = vpop.trf.xlu0
        %v637 = vpop.trf.xlu0
        %638 = vmatprep.subr.mxu0 0.0
        %639 = vmatpush1.msra.mxu0 %v260
        %640 = vmatprep.subr.mxu0 0.0
        %641 = vmatpush1.msra.mxu0 %v259
        %642 = vmatprep.subr.mxu0 0.0
        %643 = vmatpush1.msra.mxu0 %v258
        %644 = vmatprep.subr.mxu0 0.0
        %645 = vmatpush1.msra.mxu0 %v257
        %646 = vmatprep.subr.mxu0 0.0
        %647 = vmatpush1.msra.mxu0 %v256
        %648 = vmatprep.subr.mxu0 0.0
        %649 = vmatpush1.msra.mxu0 %v255
        %650 = vmatprep.subr.mxu0 0.0
        %651 = vmatpush1.msra.mxu0 %v254
        %652 = vmatprep.subr.mxu0 0.0
        %653 = vmatpush1.msra.mxu0 %v253
        %654 = vmatprep.subr.mxu0 0.0
        %655 = vmatpush1.msra.mxu0 %v252
        %656 = vmatprep.subr.mxu0 0.0
        %657 = vmatpush1.msra.mxu0 %v251
        %658 = vmatprep.subr.mxu0 0.0
        %659 = vmatpush1.msra.mxu0 %v250
        %660 = vmatprep.subr.mxu0 0.0
        %661 = vmatpush1.msra.mxu0 %v249
        %662 = vmatprep.subr.mxu0 0.0
        %663 = vmatpush1.msra.mxu0 %v248
        %664 = vmatprep.subr.mxu0 0.0
        %665 = vmatpush1.msra.mxu0 %v247
        %666 = vmatprep.subr.mxu0 0.0
        %667 = vmatpush1.msra.mxu0 %v246
        %668 = vmatprep.subr.mxu0 0.0
        %669 = vmatpush1.msra.mxu0 %v245
        %670 = vmatprep.subr.mxu0 0.0
        %671 = vmatpush2.msra.mxu0 0.0
        %672 = vmatprep.subr.mxu0 0.0
        %673 = vmatpush2.msra.mxu0 0.0
        %674 = vmatprep.subr.mxu0 0.0
        %675 = vmatpush2.msra.mxu0 0.0
        %676 = vmatprep.subr.mxu0 0.0
        %677 = vmatpush2.msra.mxu0 0.0
        %678 = vmatprep.subr.mxu0 0.0
        %679 = vmatpush2.msra.mxu0 0.0
        %680 = vmatprep.subr.mxu0 0.0
        %681 = vmatpush2.msra.mxu0 0.0
        %682 = vmatprep.subr.mxu0 0.0
        %683 = vmatpush2.msra.mxu0 0.0
        %684 = vmatprep.subr.mxu0 0.0
        %685 = vmatpush2.msra.mxu0 0.0
        %686 = vmatprep.subr.mxu0 0.0
        %687 = vmatpush2.msra.mxu0 0.0
        %688 = vmatprep.subr.mxu0 0.0
        %689 = vmatpush2.msra.mxu0 0.0
        %690 = vmatprep.subr.mxu0 0.0
        %691 = vmatpush2.msra.mxu0 0.0
        %692 = vmatprep.subr.mxu0 0.0
        %693 = vmatpush2.msra.mxu0 0.0
        %694 = vmatprep.subr.mxu0 0.0
        %695 = vmatpush2.msra.mxu0 0.0
        %696 = vmatprep.subr.mxu0 0.0
        %697 = vmatpush2.msra.mxu0 0.0
        %698 = vmatprep.subr.mxu0 0.0
        %699 = vmatpush2.msra.mxu0 0.0
        %700 = vmatprep.subr.mxu0 0.0
        %701 = vmatpush2.msra.mxu0 0.0
        %702 = vmatprep.mubr.f32.mxu0 0.0
        %703 = vmatmul.mubr.f32.gmra.mxu0 %v622
        %v704 = vpop.f32.mrf.mxu0
        %v705 = vadd.f32 0.0, %v704
        %v706 = vpop.f32.mrf.mxu0
        %707 = vmatprep.mubr.f32.mxu0 0.0
        %708 = vmatmul.mubr.f32.gmra.mxu0 %v623
        %v709 = vpop.f32.mrf.mxu0
        %v710 = vadd.f32 0.0, %v709
        %v711 = vpop.f32.mrf.mxu0
        %712 = vmatprep.mubr.f32.mxu0 0.0
        %713 = vmatmul.mubr.f32.gmra.mxu0 %v624
        %v714 = vpop.f32.mrf.mxu0
        %v715 = vadd.f32 0.0, %v714
        %v716 = vpop.f32.mrf.mxu0
        %717 = vmatprep.mubr.f32.mxu0 0.0
        %718 = vmatmul.mubr.f32.gmra.mxu0 %v625
        %v719 = vpop.f32.mrf.mxu0
        %v720 = vadd.f32 0.0, %v719
        %v721 = vpop.f32.mrf.mxu0
        %722 = vmatprep.mubr.f32.mxu0 0.0
        %723 = vmatmul.mubr.f32.gmra.mxu0 %v626
        %v724 = vpop.f32.mrf.mxu0
        %v725 = vadd.f32 0.0, %v724
        %v726 = vpop.f32.mrf.mxu0
        %727 = vmatprep.mubr.f32.mxu0 0.0
        %728 = vmatmul.mubr.f32.gmra.mxu0 %v627
        %v729 = vpop.f32.mrf.mxu0
        %v730 = vadd.f32 0.0, %v729
        %v731 = vpop.f32.mrf.mxu0
        %732 = vmatprep.mubr.f32.mxu0 0.0
        %733 = vmatmul.mubr.f32.gmra.mxu0 %v628
        %v734 = vpop.f32.mrf.mxu0
        %v735 = vadd.f32 0.0, %v734
        %v736 = vpop.f32.mrf.mxu0
        %737 = vmatprep.mubr.f32.mxu0 0.0
        %738 = vmatmul.mubr.f32.gmra.mxu0 %v629
        %v739 = vpop.f32.mrf.mxu0
        %v740 = vadd.f32 0.0, %v739
        %v741 = vpop.f32.mrf.mxu0
        %742 = vmatprep.mubr.f32.mxu0 0.0
        %743 = vmatmul.mubr.f32.gmra.mxu0 %v630
        %v744 = vpop.f32.mrf.mxu0
        %v745 = vadd.f32 0.0, %v744
        %v746 = vpop.f32.mrf.mxu0
        %747 = vmatprep.mubr.f32.mxu0 0.0
        %748 = vmatmul.mubr.f32.gmra.mxu0 %v631
        %v749 = vpop.f32.mrf.mxu0
        %v750 = vadd.f32 0.0, %v749
        %v751 = vpop.f32.mrf.mxu0
        %752 = vmatprep.mubr.f32.mxu0 0.0
        %753 = vmatmul.mubr.f32.gmra.mxu0 %v632
        %v754 = vpop.f32.mrf.mxu0
        %v755 = vadd.f32 0.0, %v754
        %v756 = vpop.f32.mrf.mxu0
        %757 = vmatprep.mubr.f32.mxu0 0.0
        %758 = vmatmul.mubr.f32.gmra.mxu0 %v633
        %v759 = vpop.f32.mrf.mxu0
        %v760 = vadd.f32 0.0, %v759
        %v761 = vpop.f32.mrf.mxu0
        %762 = vmatprep.mubr.f32.mxu0 0.0
        %763 = vmatmul.mubr.f32.gmra.mxu0 %v634
        %v764 = vpop.f32.mrf.mxu0
        %v765 = vadd.f32 0.0, %v764
        %v766 = vpop.f32.mrf.mxu0
        %767 = vmatprep.mubr.f32.mxu0 0.0
        %768 = vmatmul.mubr.f32.gmra.mxu0 %v635
        %v769 = vpop.f32.mrf.mxu0
        %v770 = vadd.f32 0.0, %v769
        %v771 = vpop.f32.mrf.mxu0
        %772 = vmatprep.mubr.f32.mxu0 0.0
        %773 = vmatmul.mubr.f32.gmra.mxu0 %v636
        %v774 = vpop.f32.mrf.mxu0
        %v775 = vadd.f32 0.0, %v774
        %v776 = vpop.f32.mrf.mxu0
        %777 = vmatprep.mubr.f32.mxu0 0.0
        %778 = vmatmul.mubr.f32.gmra.mxu0 %v637
        %v779 = vpop.f32.mrf.mxu0
        %v780 = vadd.f32 0.0, %v779
        %v781 = vpop.f32.mrf.mxu0
        %782 = vdwg.mxu0
        %v783 = vadd.f32 %v590, %v705
        %v784 = vadd.f32 %v591, %v710
        %v785 = vadd.f32 %v592, %v715
        %v786 = vadd.f32 %v593, %v720
        %v787 = vadd.f32 %v594, %v725
        %v788 = vadd.f32 %v595, %v730
        %v789 = vadd.f32 %v596, %v735
        %v790 = vadd.f32 %v597, %v740
        %v791 = vadd.f32 %v598, %v745
        %v792 = vadd.f32 %v599, %v750
        %v793 = vadd.f32 %v600, %v755
        %v794 = vadd.f32 %v601, %v760
        %v795 = vadd.f32 %v602, %v765
        %v796 = vadd.f32 %v603, %v770
        %v797 = vadd.f32 %v604, %v775
        %v798 = vadd.f32 %v605, %v780
        %799 = vst [vmem:[#allocation3] sm:$0xff] %v783
        %800 = vst [vmem:[#allocation3 + $0x8] sm:$0xff] %v784
        %801 = vst [vmem:[#allocation3 + $0x10] sm:$0xff] %v785
        %802 = vst [vmem:[#allocation3 + $0x18] sm:$0xff] %v786
        %803 = vst [vmem:[#allocation3 + $0x20] sm:$0xff] %v787
        %804 = vst [vmem:[#allocation3 + $0x28] sm:$0xff] %v788
        %805 = vst [vmem:[#allocation3 + $0x30] sm:$0xff] %v789
        %806 = vst [vmem:[#allocation3 + $0x38] sm:$0xff] %v790
        %807 = vst [vmem:[#allocation3 + $0x40] sm:$0xff] %v791
        %808 = vst [vmem:[#allocation3 + $0x48] sm:$0xff] %v792
        %809 = vst [vmem:[#allocation3 + $0x50] sm:$0xff] %v793
        %810 = vst [vmem:[#allocation3 + $0x58] sm:$0xff] %v794
        %811 = vst [vmem:[#allocation3 + $0x60] sm:$0xff] %v795
        %812 = vst [vmem:[#allocation3 + $0x68] sm:$0xff] %v796
        %813 = vst [vmem:[#allocation3 + $0x70] sm:$0xff] %v797
        %814 = vst [vmem:[#allocation3 + $0x78] sm:$0xff] %v798
        %p815 = scmp.eq.s32.totalorder %s20, 1
        // Predicated region
        $region41: #{tpu_custom_call.1} parent=27 // pred_check
          %p816 = pneg %p815
        $region42: #{tpu_custom_call.1} parent=27 // pred_check_branch
          %818 = sbr.rel (%p816) target = $region44
        $region43: #{tpu_custom_call.1} parent=27 // pred_region
          %v819 = vld [vmem:[#allocation2] sm:$0xff]
          %v820 = vld [vmem:[#allocation2 + $0x8] sm:$0xff]
          %v821 = vld [vmem:[#allocation2 + $0x10] sm:$0xff]
          %v822 = vld [vmem:[#allocation2 + $0x18] sm:$0xff]
          %v823 = vld [vmem:[#allocation2 + $0x20] sm:$0xff]
          %v824 = vld [vmem:[#allocation2 + $0x28] sm:$0xff]
          %v825 = vld [vmem:[#allocation2 + $0x30] sm:$0xff]
          %v826 = vld [vmem:[#allocation2 + $0x38] sm:$0xff]
          %v827 = vld [vmem:[#allocation2 + $0x40] sm:$0xff]
          %v828 = vld [vmem:[#allocation2 + $0x48] sm:$0xff]
          %v829 = vld [vmem:[#allocation2 + $0x50] sm:$0xff]
          %v830 = vld [vmem:[#allocation2 + $0x58] sm:$0xff]
          %v831 = vld [vmem:[#allocation2 + $0x60] sm:$0xff]
          %v832 = vld [vmem:[#allocation2 + $0x68] sm:$0xff]
          %v833 = vld [vmem:[#allocation2 + $0x70] sm:$0xff]
          %v834 = vld [vmem:[#allocation2 + $0x78] sm:$0xff]
          %v835 = vld [vmem:[#allocation3] sm:$0xff]
          %v836 = vld [vmem:[#allocation3 + $0x8] sm:$0xff]
          %v837 = vld [vmem:[#allocation3 + $0x10] sm:$0xff]
          %v838 = vld [vmem:[#allocation3 + $0x18] sm:$0xff]
          %v839 = vld [vmem:[#allocation3 + $0x20] sm:$0xff]
          %v840 = vld [vmem:[#allocation3 + $0x28] sm:$0xff]
          %v841 = vld [vmem:[#allocation3 + $0x30] sm:$0xff]
          %v842 = vld [vmem:[#allocation3 + $0x38] sm:$0xff]
          %v843 = vld [vmem:[#allocation3 + $0x40] sm:$0xff]
          %v844 = vld [vmem:[#allocation3 + $0x48] sm:$0xff]
          %v845 = vld [vmem:[#allocation3 + $0x50] sm:$0xff]
          %v846 = vld [vmem:[#allocation3 + $0x58] sm:$0xff]
          %v847 = vld [vmem:[#allocation3 + $0x60] sm:$0xff]
          %v848 = vld [vmem:[#allocation3 + $0x68] sm:$0xff]
          %v849 = vld [vmem:[#allocation3 + $0x70] sm:$0xff]
          %v850 = vld [vmem:[#allocation3 + $0x78] sm:$0xff]
          %v851 = vld [vmem:[#allocation4] sm:$0x1]
          %v852 = vld [vmem:[#allocation4 + $0x1] sm:$0x1]
          %v853 = vld [vmem:[#allocation4 + $0x2] sm:$0x1]
          %v854 = vmul.f32 %v851, 0.00390625
          %v855 = vmul.f32 %v852, 0.00390625
          %v856 = vlaneseq
          %v857 = vshrl.u32 %v856, 7
          %v858 = vadd.s32 %v857, 8
          %v859 = vadd.s32 %v857, 16
          %v860 = vadd.s32 %v857, 24
          %v861 = vadd.s32 %v857, 32
          %v862 = vadd.s32 %v857, 40
          %v863 = vadd.s32 %v857, 48
          %v864 = vadd.s32 %v857, 56
          %v865 = vadd.s32 %v857, 64
          %v866 = vadd.s32 %v857, 72
          %v867 = vadd.s32 %v857, 80
          %v868 = vadd.s32 %v857, 88
          %v869 = vadd.s32 %v857, 96
          %v870 = vadd.s32 %v857, 104
          %v871 = vadd.s32 %v857, 112
          %v872 = vadd.s32 %v857, 120
          %v873 = vlaneseq
          %v874 = vand.u32 %v873, 127
          %vm875 = vcmp.eq.s32.totalorder %v857, %v874
          %vm876 = vcmp.eq.s32.totalorder %v858, %v874
          %vm877 = vcmp.eq.s32.totalorder %v859, %v874
          %vm878 = vcmp.eq.s32.totalorder %v860, %v874
          %vm879 = vcmp.eq.s32.totalorder %v861, %v874
          %vm880 = vcmp.eq.s32.totalorder %v862, %v874
          %vm881 = vcmp.eq.s32.totalorder %v863, %v874
          %vm882 = vcmp.eq.s32.totalorder %v864, %v874
          %vm883 = vcmp.eq.s32.totalorder %v865, %v874
          %vm884 = vcmp.eq.s32.totalorder %v866, %v874
          %vm885 = vcmp.eq.s32.totalorder %v867, %v874
          %vm886 = vcmp.eq.s32.totalorder %v868, %v874
          %vm887 = vcmp.eq.s32.totalorder %v869, %v874
          %vm888 = vcmp.eq.s32.totalorder %v870, %v874
          %vm889 = vcmp.eq.s32.totalorder %v871, %v874
          %vm890 = vcmp.eq.s32.totalorder %v872, %v874
          %v891 = vsel %vm875, %v819, 0.0
          %v892 = vsel %vm876, %v820, 0.0
          %v893 = vsel %vm877, %v821, 0.0
          %v894 = vsel %vm878, %v822, 0.0
          %v895 = vsel %vm879, %v823, 0.0
          %v896 = vsel %vm880, %v824, 0.0
          %v897 = vsel %vm881, %v825, 0.0
          %v898 = vsel %vm882, %v826, 0.0
          %v899 = vsel %vm883, %v827, 0.0
          %v900 = vsel %vm884, %v828, 0.0
          %v901 = vsel %vm885, %v829, 0.0
          %v902 = vsel %vm886, %v830, 0.0
          %v903 = vsel %vm887, %v831, 0.0
          %v904 = vsel %vm888, %v832, 0.0
          %v905 = vsel %vm889, %v833, 0.0
          %v906 = vsel %vm890, %v834, 0.0
          %v907 = vadd.f32 %v891, %v892
          %v908 = vadd.f32 %v907, %v893
          %v909 = vadd.f32 %v908, %v894
          %v910 = vadd.f32 %v909, %v895
          %v911 = vadd.f32 %v910, %v896
          %v912 = vadd.f32 %v911, %v897
          %v913 = vadd.f32 %v912, %v898
          %v914 = vadd.f32 %v913, %v899
          %v915 = vadd.f32 %v914, %v900
          %v916 = vadd.f32 %v915, %v901
          %v917 = vadd.f32 %v916, %v902
          %v918 = vadd.f32 %v917, %v903
          %v919 = vadd.f32 %v918, %v904
          %v920 = vadd.f32 %v919, %v905
          %v921 = vadd.f32 %v920, %v906
          %v922 = vrot.slane %v921, 4
          %v923 = vadd.f32 %v921, %v922
          %v924 = vrot.slane %v923, 2
          %v925 = vadd.f32 %v923, %v924
          %v926 = vrot.slane %v925, 1
          %v927 = vadd.f32 %v925, %v926
          %v928 = vsel %vm875, %v835, 0.0
          %v929 = vsel %vm876, %v836, 0.0
          %v930 = vsel %vm877, %v837, 0.0
          %v931 = vsel %vm878, %v838, 0.0
          %v932 = vsel %vm879, %v839, 0.0
          %v933 = vsel %vm880, %v840, 0.0
          %v934 = vsel %vm881, %v841, 0.0
          %v935 = vsel %vm882, %v842, 0.0
          %v936 = vsel %vm883, %v843, 0.0
          %v937 = vsel %vm884, %v844, 0.0
          %v938 = vsel %vm885, %v845, 0.0
          %v939 = vsel %vm886, %v846, 0.0
          %v940 = vsel %vm887, %v847, 0.0
          %v941 = vsel %vm888, %v848, 0.0
          %v942 = vsel %vm889, %v849, 0.0
          %v943 = vsel %vm890, %v850, 0.0
          %v944 = vadd.f32 %v928, %v929
          %v945 = vadd.f32 %v944, %v930
          %v946 = vadd.f32 %v945, %v931
          %v947 = vadd.f32 %v946, %v932
          %v948 = vadd.f32 %v947, %v933
          %v949 = vadd.f32 %v948, %v934
          %v950 = vadd.f32 %v949, %v935
          %v951 = vadd.f32 %v950, %v936
          %v952 = vadd.f32 %v951, %v937
          %v953 = vadd.f32 %v952, %v938
          %v954 = vadd.f32 %v953, %v939
          %v955 = vadd.f32 %v954, %v940
          %v956 = vadd.f32 %v955, %v941
          %v957 = vadd.f32 %v956, %v942
          %v958 = vadd.f32 %v957, %v943
          %v959 = vrot.slane %v958, 4
          %v960 = vadd.f32 %v958, %v959
          %v961 = vrot.slane %v960, 2
          %v962 = vadd.f32 %v960, %v961
          %v963 = vrot.slane %v962, 1
          %v964 = vadd.f32 %v962, %v963
          %v965 = vmul.f32 %v854, 256.0
          %v966 = vmul.f32 %v965, %v854
          %v967 = vsub.f32 %v927, %v966
          %v968 = vmul.f32 %v967, 0.003921569
          %v969 = vmul.f32 %v855, 256.0
          %v970 = vmul.f32 %v969, %v855
          %v971 = vsub.f32 %v964, %v970
          %v972 = vmul.f32 %v971, 0.003921569
          %vm973 = vcmask 1040384
          %v974 = vsel %vm973, %v853, 0.0
          %975 = vadd.xlane.f32.xlu0 %v974
          %v976 = vpop.xlane.xlu0 %975
          %v977 = vrot.slane %v976, 4
          %v978 = vadd.f32 %v976, %v977
          %v979 = vrot.slane %v978, 2
          %v980 = vadd.f32 %v978, %v979
          %v981 = vrot.slane %v980, 1
          %v982 = vadd.f32 %v980, %v981
          %s983 = vtos %v982
          %s984 = smul.f32 %s983, 0.00390625
          %vm985 = vcmp.lt.s32.totalorder %v874, 96
          %v986 = vadd.f32 %v968, 0.0001
          %v987 = vrsqrt.pop %v986
          %v988 = vmul.f32 %v986, %v987
          %vm989 = vcmp.eq.f32.partialorder %v986, inf
          %v990 = vsel %vm989, %v986, %v988
          %vm991 = vcmp.eq.f32.partialorder %v986, 0.0
          %v992 = vand.u32 %v986, 2147483648
          %v993 = vsel %vm991, %v992, %v990
          %v994 = vadd.f32 %v972, 0.0001
          %v995 = vrsqrt.pop %v994
          %v996 = vmul.f32 %v994, %v995
          %vm997 = vcmp.eq.f32.partialorder %v994, inf
          %v998 = vsel %vm997, %v994, %v996
          %vm999 = vcmp.eq.f32.partialorder %v994, 0.0
          %v1000 = vand.u32 %v994, 2147483648
          %v1001 = vsel %vm999, %v1000, %v998
          %v1002 = vsub.f32 1.0, %v993
          %v1003 = vmax.f32 %v1002, 0.0
          %v1004 = vsel %vm985, %v1003, 0.0
          %v1005 = vsub.f32 1.0, %v1001
          %v1006 = vmax.f32 %v1005, 0.0
          %v1007 = vsel %vm985, %v1006, 0.0
          %v1008 = vsel %vm973, %v1004, 0.0
          %1009 = vadd.xlane.f32.xlu0 %v1008
          %v1010 = vpop.xlane.xlu0 %1009
          %v1011 = vrot.slane %v1010, 4
          %v1012 = vadd.f32 %v1010, %v1011
          %v1013 = vrot.slane %v1012, 2
          %v1014 = vadd.f32 %v1012, %v1013
          %v1015 = vrot.slane %v1014, 1
          %v1016 = vadd.f32 %v1014, %v1015
          %s1017 = vtos %v1016
          %v1018 = vsel %vm973, %v1007, 0.0
          %1019 = vadd.xlane.f32.xlu0 %v1018
          %v1020 = vpop.xlane.xlu0 %1019
          %v1021 = vrot.slane %v1020, 4
          %v1022 = vadd.f32 %v1020, %v1021
          %v1023 = vrot.slane %v1022, 2
          %v1024 = vadd.f32 %v1022, %v1023
          %v1025 = vrot.slane %v1024, 1
          %v1026 = vadd.f32 %v1024, %v1025
          %s1027 = vtos %v1026
          %s1028 = sadd.f32 %s1017, %s1027
          %s1029 = smul.f32 %s1028, 0.0052083335
          %v1030 = vlaneseq
          %v1031 = vshrl.u32 %v1030, 7
          %v1032 = vsub.s32 0, %v1031
          %v1033 = vrot.slane %v854, %v1032
          %v1034 = vlaneseq
          %v1035 = vshrl.u32 %v1034, 7
          %v1036 = vsub.s32 0, %v1035
          %v1037 = vrot.slane %v855, %v1036
          %1038 = vxpose.xlu0.b32.start [1/16] %v1033, 128
          %1039 = vxpose.xlu0.b32.cont [2/16] 0.0, 128
          %1040 = vxpose.xlu0.b32.cont [3/16] 0.0, 128
          %1041 = vxpose.xlu0.b32.cont [4/16] 0.0, 128
          %1042 = vxpose.xlu0.b32.cont [5/16] 0.0, 128
          %1043 = vxpose.xlu0.b32.cont [6/16] 0.0, 128
          %1044 = vxpose.xlu0.b32.cont [7/16] 0.0, 128
          %1045 = vxpose.xlu0.b32.cont [8/16] 0.0, 128
          %1046 = vxpose.xlu0.b32.cont [9/16] 0.0, 128
          %1047 = vxpose.xlu0.b32.cont [10/16] 0.0, 128
          %1048 = vxpose.xlu0.b32.cont [11/16] 0.0, 128
          %1049 = vxpose.xlu0.b32.cont [12/16] 0.0, 128
          %1050 = vxpose.xlu0.b32.cont [13/16] 0.0, 128
          %1051 = vxpose.xlu0.b32.cont [14/16] 0.0, 128
          %1052 = vxpose.xlu0.b32.cont [15/16] 0.0, 128
          %1053 = vxpose.xlu0.b32.end [16/16] 0.0, 128
          %v1054 = vpop.trf.xlu0
          %v1055 = vpop.trf.xlu0
          %v1056 = vpop.trf.xlu0
          %v1057 = vpop.trf.xlu0
          %v1058 = vpop.trf.xlu0
          %v1059 = vpop.trf.xlu0
          %v1060 = vpop.trf.xlu0
          %v1061 = vpop.trf.xlu0
          %v1062 = vpop.trf.xlu0
          %v1063 = vpop.trf.xlu0
          %v1064 = vpop.trf.xlu0
          %v1065 = vpop.trf.xlu0
          %v1066 = vpop.trf.xlu0
          %v1067 = vpop.trf.xlu0
          %v1068 = vpop.trf.xlu0
          %v1069 = vpop.trf.xlu0
          %vm1070 = vcmask 64512
          %v1072 = vsel %vm1070, %v1054, 0
          %v1075 = vsel %vm1070, %v1055, 0
          %v1078 = vsel %vm1070, %v1056, 0
          %v1081 = vsel %vm1070, %v1057, 0
          %v1084 = vsel %vm1070, %v1058, 0
          %v1087 = vsel %vm1070, %v1059, 0
          %v1090 = vsel %vm1070, %v1060, 0
          %v1093 = vsel %vm1070, %v1061, 0
          %v1096 = vsel %vm1070, %v1062, 0
          %v1099 = vsel %vm1070, %v1063, 0
          %v1102 = vsel %vm1070, %v1064, 0
          %v1105 = vsel %vm1070, %v1065, 0
          %v1108 = vsel %vm1070, %v1066, 0
          %v1111 = vsel %vm1070, %v1067, 0
          %v1114 = vsel %vm1070, %v1068, 0
          %v1117 = vsel %vm1070, %v1069, 0
          %1119 = vmatprep.subr.mxu0 0.0
          %1120 = vmatpush1.msra.mxu0 0.0
          %1121 = vmatprep.subr.mxu0 0.0
          %1122 = vmatpush1.msra.mxu0 0.0
          %1123 = vmatprep.subr.mxu0 0.0
          %1124 = vmatpush1.msra.mxu0 0.0
          %1125 = vmatprep.subr.mxu0 0.0
          %1126 = vmatpush1.msra.mxu0 0.0
          %1127 = vmatprep.subr.mxu0 0.0
          %1128 = vmatpush1.msra.mxu0 0.0
          %1129 = vmatprep.subr.mxu0 0.0
          %1130 = vmatpush1.msra.mxu0 0.0
          %1131 = vmatprep.subr.mxu0 0.0
          %1132 = vmatpush1.msra.mxu0 0.0
          %1133 = vmatprep.subr.mxu0 0.0
          %1134 = vmatpush1.msra.mxu0 0.0
          %1135 = vmatprep.subr.mxu0 0.0
          %1136 = vmatpush1.msra.mxu0 0.0
          %1137 = vmatprep.subr.mxu0 0.0
          %1138 = vmatpush1.msra.mxu0 0.0
          %1139 = vmatprep.subr.mxu0 0.0
          %1140 = vmatpush1.msra.mxu0 0.0
          %1141 = vmatprep.subr.mxu0 0.0
          %1142 = vmatpush1.msra.mxu0 0.0
          %1143 = vmatprep.subr.mxu0 0.0
          %1144 = vmatpush1.msra.mxu0 0.0
          %1145 = vmatprep.subr.mxu0 0.0
          %1146 = vmatpush1.msra.mxu0 0.0
          %1147 = vmatprep.subr.mxu0 0.0
          %1148 = vmatpush1.msra.mxu0 0.0
          %1149 = vmatprep.subr.mxu0 0.0
          %1150 = vmatpush1.msra.mxu0 %v1033
          %1151 = vmatprep.subr.mxu0 0.0
          %1152 = vmatpush2.msra.mxu0 0.0
          %1153 = vmatprep.subr.mxu0 0.0
          %1154 = vmatpush2.msra.mxu0 0.0
          %1155 = vmatprep.subr.mxu0 0.0
          %1156 = vmatpush2.msra.mxu0 0.0
          %1157 = vmatprep.subr.mxu0 0.0
          %1158 = vmatpush2.msra.mxu0 0.0
          %1159 = vmatprep.subr.mxu0 0.0
          %1160 = vmatpush2.msra.mxu0 0.0
          %1161 = vmatprep.subr.mxu0 0.0
          %1162 = vmatpush2.msra.mxu0 0.0
          %1163 = vmatprep.subr.mxu0 0.0
          %1164 = vmatpush2.msra.mxu0 0.0
          %1165 = vmatprep.subr.mxu0 0.0
          %1166 = vmatpush2.msra.mxu0 0.0
          %1167 = vmatprep.subr.mxu0 0.0
          %1168 = vmatpush2.msra.mxu0 0.0
          %1169 = vmatprep.subr.mxu0 0.0
          %1170 = vmatpush2.msra.mxu0 0.0
          %1171 = vmatprep.subr.mxu0 0.0
          %1172 = vmatpush2.msra.mxu0 0.0
          %1173 = vmatprep.subr.mxu0 0.0
          %1174 = vmatpush2.msra.mxu0 0.0
          %1175 = vmatprep.subr.mxu0 0.0
          %1176 = vmatpush2.msra.mxu0 0.0
          %1177 = vmatprep.subr.mxu0 0.0
          %1178 = vmatpush2.msra.mxu0 0.0
          %1179 = vmatprep.subr.mxu0 0.0
          %1180 = vmatpush2.msra.mxu0 0.0
          %1181 = vmatprep.subr.mxu0 0.0
          %1182 = vmatpush2.msra.mxu0 0.0
          %1183 = vmatprep.mubr.f32.mxu0 0.0
          %1184 = vmatmul.mubr.f32.gmra.mxu0 %v1072
          %v1185 = vpop.f32.mrf.mxu0
          %v1186 = vadd.f32 0.0, %v1185
          %v1187 = vpop.f32.mrf.mxu0
          %1188 = vmatprep.mubr.f32.mxu0 0.0
          %1189 = vmatmul.mubr.f32.gmra.mxu0 %v1075
          %v1190 = vpop.f32.mrf.mxu0
          %v1191 = vadd.f32 0.0, %v1190
          %v1192 = vpop.f32.mrf.mxu0
          %1193 = vmatprep.mubr.f32.mxu0 0.0
          %1194 = vmatmul.mubr.f32.gmra.mxu0 %v1078
          %v1195 = vpop.f32.mrf.mxu0
          %v1196 = vadd.f32 0.0, %v1195
          %v1197 = vpop.f32.mrf.mxu0
          %1198 = vmatprep.mubr.f32.mxu0 0.0
          %1199 = vmatmul.mubr.f32.gmra.mxu0 %v1081
          %v1200 = vpop.f32.mrf.mxu0
          %v1201 = vadd.f32 0.0, %v1200
          %v1202 = vpop.f32.mrf.mxu0
          %1203 = vmatprep.mubr.f32.mxu0 0.0
          %1204 = vmatmul.mubr.f32.gmra.mxu0 %v1084
          %v1205 = vpop.f32.mrf.mxu0
          %v1206 = vadd.f32 0.0, %v1205
          %v1207 = vpop.f32.mrf.mxu0
          %1208 = vmatprep.mubr.f32.mxu0 0.0
          %1209 = vmatmul.mubr.f32.gmra.mxu0 %v1087
          %v1210 = vpop.f32.mrf.mxu0
          %v1211 = vadd.f32 0.0, %v1210
          %v1212 = vpop.f32.mrf.mxu0
          %1213 = vmatprep.mubr.f32.mxu0 0.0
          %1214 = vmatmul.mubr.f32.gmra.mxu0 %v1090
          %v1215 = vpop.f32.mrf.mxu0
          %v1216 = vadd.f32 0.0, %v1215
          %v1217 = vpop.f32.mrf.mxu0
          %1218 = vmatprep.mubr.f32.mxu0 0.0
          %1219 = vmatmul.mubr.f32.gmra.mxu0 %v1093
          %v1220 = vpop.f32.mrf.mxu0
          %v1221 = vadd.f32 0.0, %v1220
          %v1222 = vpop.f32.mrf.mxu0
          %1223 = vmatprep.mubr.f32.mxu0 0.0
          %1224 = vmatmul.mubr.f32.gmra.mxu0 %v1096
          %v1225 = vpop.f32.mrf.mxu0
          %v1226 = vadd.f32 0.0, %v1225
          %v1227 = vpop.f32.mrf.mxu0
          %1228 = vmatprep.mubr.f32.mxu0 0.0
          %1229 = vmatmul.mubr.f32.gmra.mxu0 %v1099
          %v1230 = vpop.f32.mrf.mxu0
          %v1231 = vadd.f32 0.0, %v1230
          %v1232 = vpop.f32.mrf.mxu0
          %1233 = vmatprep.mubr.f32.mxu0 0.0
          %1234 = vmatmul.mubr.f32.gmra.mxu0 %v1102
          %v1235 = vpop.f32.mrf.mxu0
          %v1236 = vadd.f32 0.0, %v1235
          %v1237 = vpop.f32.mrf.mxu0
          %1238 = vmatprep.mubr.f32.mxu0 0.0
          %1239 = vmatmul.mubr.f32.gmra.mxu0 %v1105
          %v1240 = vpop.f32.mrf.mxu0
          %v1241 = vadd.f32 0.0, %v1240
          %v1242 = vpop.f32.mrf.mxu0
          %1243 = vmatprep.mubr.f32.mxu0 0.0
          %1244 = vmatmul.mubr.f32.gmra.mxu0 %v1108
          %v1245 = vpop.f32.mrf.mxu0
          %v1246 = vadd.f32 0.0, %v1245
          %v1247 = vpop.f32.mrf.mxu0
          %1248 = vmatprep.mubr.f32.mxu0 0.0
          %1249 = vmatmul.mubr.f32.gmra.mxu0 %v1111
          %v1250 = vpop.f32.mrf.mxu0
          %v1251 = vadd.f32 0.0, %v1250
          %v1252 = vpop.f32.mrf.mxu0
          %1253 = vmatprep.mubr.f32.mxu0 0.0
          %1254 = vmatmul.mubr.f32.gmra.mxu0 %v1114
          %v1255 = vpop.f32.mrf.mxu0
          %v1256 = vadd.f32 0.0, %v1255
          %v1257 = vpop.f32.mrf.mxu0
          %1258 = vmatprep.mubr.f32.mxu0 0.0
          %1259 = vmatmul.mubr.f32.gmra.mxu0 %v1117
          %v1260 = vpop.f32.mrf.mxu0
          %v1261 = vadd.f32 0.0, %v1260
          %v1262 = vpop.f32.mrf.mxu0
          %1263 = vdwg.mxu0
          %1264 = vxpose.xlu0.b32.start [1/16] %v1037, 128
          %1265 = vxpose.xlu0.b32.cont [2/16] 0.0, 128
          %1266 = vxpose.xlu0.b32.cont [3/16] 0.0, 128
          %1267 = vxpose.xlu0.b32.cont [4/16] 0.0, 128
          %1268 = vxpose.xlu0.b32.cont [5/16] 0.0, 128
          %1269 = vxpose.xlu0.b32.cont [6/16] 0.0, 128
          %1270 = vxpose.xlu0.b32.cont [7/16] 0.0, 128
          %1271 = vxpose.xlu0.b32.cont [8/16] 0.0, 128
          %1272 = vxpose.xlu0.b32.cont [9/16] 0.0, 128
          %1273 = vxpose.xlu0.b32.cont [10/16] 0.0, 128
          %1274 = vxpose.xlu0.b32.cont [11/16] 0.0, 128
          %1275 = vxpose.xlu0.b32.cont [12/16] 0.0, 128
          %1276 = vxpose.xlu0.b32.cont [13/16] 0.0, 128
          %1277 = vxpose.xlu0.b32.cont [14/16] 0.0, 128
          %1278 = vxpose.xlu0.b32.cont [15/16] 0.0, 128
          %1279 = vxpose.xlu0.b32.end [16/16] 0.0, 128
          %v1280 = vpop.trf.xlu0
          %v1281 = vpop.trf.xlu0
          %v1282 = vpop.trf.xlu0
          %v1283 = vpop.trf.xlu0
          %v1284 = vpop.trf.xlu0
          %v1285 = vpop.trf.xlu0
          %v1286 = vpop.trf.xlu0
          %v1287 = vpop.trf.xlu0
          %v1288 = vpop.trf.xlu0
          %v1289 = vpop.trf.xlu0
          %v1290 = vpop.trf.xlu0
          %v1291 = vpop.trf.xlu0
          %v1292 = vpop.trf.xlu0
          %v1293 = vpop.trf.xlu0
          %v1294 = vpop.trf.xlu0
          %v1295 = vpop.trf.xlu0
          %v1297 = vsel %vm1070, %v1280, 0
          %v1300 = vsel %vm1070, %v1281, 0
          %v1303 = vsel %vm1070, %v1282, 0
          %v1306 = vsel %vm1070, %v1283, 0
          %v1309 = vsel %vm1070, %v1284, 0
          %v1312 = vsel %vm1070, %v1285, 0
          %v1315 = vsel %vm1070, %v1286, 0
          %v1318 = vsel %vm1070, %v1287, 0
          %v1321 = vsel %vm1070, %v1288, 0
          %v1324 = vsel %vm1070, %v1289, 0
          %v1327 = vsel %vm1070, %v1290, 0
          %v1330 = vsel %vm1070, %v1291, 0
          %v1333 = vsel %vm1070, %v1292, 0
          %v1336 = vsel %vm1070, %v1293, 0
          %v1339 = vsel %vm1070, %v1294, 0
          %v1342 = vsel %vm1070, %v1295, 0
          %1344 = vmatprep.subr.mxu0 0.0
          %1345 = vmatpush1.msra.mxu0 0.0
          %1346 = vmatprep.subr.mxu0 0.0
          %1347 = vmatpush1.msra.mxu0 0.0
          %1348 = vmatprep.subr.mxu0 0.0
          %1349 = vmatpush1.msra.mxu0 0.0
          %1350 = vmatprep.subr.mxu0 0.0
          %1351 = vmatpush1.msra.mxu0 0.0
          %1352 = vmatprep.subr.mxu0 0.0
          %1353 = vmatpush1.msra.mxu0 0.0
          %1354 = vmatprep.subr.mxu0 0.0
          %1355 = vmatpush1.msra.mxu0 0.0
          %1356 = vmatprep.subr.mxu0 0.0
          %1357 = vmatpush1.msra.mxu0 0.0
          %1358 = vmatprep.subr.mxu0 0.0
          %1359 = vmatpush1.msra.mxu0 0.0
          %1360 = vmatprep.subr.mxu0 0.0
          %1361 = vmatpush1.msra.mxu0 0.0
          %1362 = vmatprep.subr.mxu0 0.0
          %1363 = vmatpush1.msra.mxu0 0.0
          %1364 = vmatprep.subr.mxu0 0.0
          %1365 = vmatpush1.msra.mxu0 0.0
          %1366 = vmatprep.subr.mxu0 0.0
          %1367 = vmatpush1.msra.mxu0 0.0
          %1368 = vmatprep.subr.mxu0 0.0
          %1369 = vmatpush1.msra.mxu0 0.0
          %1370 = vmatprep.subr.mxu0 0.0
          %1371 = vmatpush1.msra.mxu0 0.0
          %1372 = vmatprep.subr.mxu0 0.0
          %1373 = vmatpush1.msra.mxu0 0.0
          %1374 = vmatprep.subr.mxu0 0.0
          %1375 = vmatpush1.msra.mxu0 %v1037
          %1376 = vmatprep.subr.mxu0 0.0
          %1377 = vmatpush2.msra.mxu0 0.0
          %1378 = vmatprep.subr.mxu0 0.0
          %1379 = vmatpush2.msra.mxu0 0.0
          %1380 = vmatprep.subr.mxu0 0.0
          %1381 = vmatpush2.msra.mxu0 0.0
          %1382 = vmatprep.subr.mxu0 0.0
          %1383 = vmatpush2.msra.mxu0 0.0
          %1384 = vmatprep.subr.mxu0 0.0
          %1385 = vmatpush2.msra.mxu0 0.0
          %1386 = vmatprep.subr.mxu0 0.0
          %1387 = vmatpush2.msra.mxu0 0.0
          %1388 = vmatprep.subr.mxu0 0.0
          %1389 = vmatpush2.msra.mxu0 0.0
          %1390 = vmatprep.subr.mxu0 0.0
          %1391 = vmatpush2.msra.mxu0 0.0
          %1392 = vmatprep.subr.mxu0 0.0
          %1393 = vmatpush2.msra.mxu0 0.0
          %1394 = vmatprep.subr.mxu0 0.0
          %1395 = vmatpush2.msra.mxu0 0.0
          %1396 = vmatprep.subr.mxu0 0.0
          %1397 = vmatpush2.msra.mxu0 0.0
          %1398 = vmatprep.subr.mxu0 0.0
          %1399 = vmatpush2.msra.mxu0 0.0
          %1400 = vmatprep.subr.mxu0 0.0
          %1401 = vmatpush2.msra.mxu0 0.0
          %1402 = vmatprep.subr.mxu0 0.0
          %1403 = vmatpush2.msra.mxu0 0.0
          %1404 = vmatprep.subr.mxu0 0.0
          %1405 = vmatpush2.msra.mxu0 0.0
          %1406 = vmatprep.subr.mxu0 0.0
          %1407 = vmatpush2.msra.mxu0 0.0
          %1408 = vmatprep.mubr.f32.mxu0 0.0
          %1409 = vmatmul.mubr.f32.gmra.mxu0 %v1297
          %v1410 = vpop.f32.mrf.mxu0
          %v1411 = vadd.f32 0.0, %v1410
          %v1412 = vpop.f32.mrf.mxu0
          %1413 = vmatprep.mubr.f32.mxu0 0.0
          %1414 = vmatmul.mubr.f32.gmra.mxu0 %v1300
          %v1415 = vpop.f32.mrf.mxu0
          %v1416 = vadd.f32 0.0, %v1415
          %v1417 = vpop.f32.mrf.mxu0
          %1418 = vmatprep.mubr.f32.mxu0 0.0
          %1419 = vmatmul.mubr.f32.gmra.mxu0 %v1303
          %v1420 = vpop.f32.mrf.mxu0
          %v1421 = vadd.f32 0.0, %v1420
          %v1422 = vpop.f32.mrf.mxu0
          %1423 = vmatprep.mubr.f32.mxu0 0.0
          %1424 = vmatmul.mubr.f32.gmra.mxu0 %v1306
          %v1425 = vpop.f32.mrf.mxu0
          %v1426 = vadd.f32 0.0, %v1425
          %v1427 = vpop.f32.mrf.mxu0
          %1428 = vmatprep.mubr.f32.mxu0 0.0
          %1429 = vmatmul.mubr.f32.gmra.mxu0 %v1309
          %v1430 = vpop.f32.mrf.mxu0
          %v1431 = vadd.f32 0.0, %v1430
          %v1432 = vpop.f32.mrf.mxu0
          %1433 = vmatprep.mubr.f32.mxu0 0.0
          %1434 = vmatmul.mubr.f32.gmra.mxu0 %v1312
          %v1435 = vpop.f32.mrf.mxu0
          %v1436 = vadd.f32 0.0, %v1435
          %v1437 = vpop.f32.mrf.mxu0
          %1438 = vmatprep.mubr.f32.mxu0 0.0
          %1439 = vmatmul.mubr.f32.gmra.mxu0 %v1315
          %v1440 = vpop.f32.mrf.mxu0
          %v1441 = vadd.f32 0.0, %v1440
          %v1442 = vpop.f32.mrf.mxu0
          %1443 = vmatprep.mubr.f32.mxu0 0.0
          %1444 = vmatmul.mubr.f32.gmra.mxu0 %v1318
          %v1445 = vpop.f32.mrf.mxu0
          %v1446 = vadd.f32 0.0, %v1445
          %v1447 = vpop.f32.mrf.mxu0
          %1448 = vmatprep.mubr.f32.mxu0 0.0
          %1449 = vmatmul.mubr.f32.gmra.mxu0 %v1321
          %v1450 = vpop.f32.mrf.mxu0
          %v1451 = vadd.f32 0.0, %v1450
          %v1452 = vpop.f32.mrf.mxu0
          %1453 = vmatprep.mubr.f32.mxu0 0.0
          %1454 = vmatmul.mubr.f32.gmra.mxu0 %v1324
          %v1455 = vpop.f32.mrf.mxu0
          %v1456 = vadd.f32 0.0, %v1455
          %v1457 = vpop.f32.mrf.mxu0
          %1458 = vmatprep.mubr.f32.mxu0 0.0
          %1459 = vmatmul.mubr.f32.gmra.mxu0 %v1327
          %v1460 = vpop.f32.mrf.mxu0
          %v1461 = vadd.f32 0.0, %v1460
          %v1462 = vpop.f32.mrf.mxu0
          %1463 = vmatprep.mubr.f32.mxu0 0.0
          %1464 = vmatmul.mubr.f32.gmra.mxu0 %v1330
          %v1465 = vpop.f32.mrf.mxu0
          %v1466 = vadd.f32 0.0, %v1465
          %v1467 = vpop.f32.mrf.mxu0
          %1468 = vmatprep.mubr.f32.mxu0 0.0
          %1469 = vmatmul.mubr.f32.gmra.mxu0 %v1333
          %v1470 = vpop.f32.mrf.mxu0
          %v1471 = vadd.f32 0.0, %v1470
          %v1472 = vpop.f32.mrf.mxu0
          %1473 = vmatprep.mubr.f32.mxu0 0.0
          %1474 = vmatmul.mubr.f32.gmra.mxu0 %v1336
          %v1475 = vpop.f32.mrf.mxu0
          %v1476 = vadd.f32 0.0, %v1475
          %v1477 = vpop.f32.mrf.mxu0
          %1478 = vmatprep.mubr.f32.mxu0 0.0
          %1479 = vmatmul.mubr.f32.gmra.mxu0 %v1339
          %v1480 = vpop.f32.mrf.mxu0
          %v1481 = vadd.f32 0.0, %v1480
          %v1482 = vpop.f32.mrf.mxu0
          %1483 = vmatprep.mubr.f32.mxu0 0.0
          %1484 = vmatmul.mubr.f32.gmra.mxu0 %v1342
          %v1485 = vpop.f32.mrf.mxu0
          %v1486 = vadd.f32 0.0, %v1485
          %v1487 = vpop.f32.mrf.mxu0
          %1488 = vdwg.mxu0
          %v1489 = vmul.f32 %v1186, 32.0
          %v1490 = vmul.f32 %v1191, 32.0
          %v1491 = vmul.f32 %v1196, 32.0
          %v1492 = vmul.f32 %v1201, 32.0
          %v1493 = vmul.f32 %v1206, 32.0
          %v1494 = vmul.f32 %v1211, 32.0
          %v1495 = vmul.f32 %v1216, 32.0
          %v1496 = vmul.f32 %v1221, 32.0
          %v1497 = vmul.f32 %v1226, 32.0
          %v1498 = vmul.f32 %v1231, 32.0
          %v1499 = vmul.f32 %v1236, 32.0
          %v1500 = vmul.f32 %v1241, 32.0
          %v1501 = vmul.f32 %v1246, 32.0
          %v1502 = vmul.f32 %v1251, 32.0
          %v1503 = vmul.f32 %v1256, 32.0
          %v1504 = vmul.f32 %v1261, 32.0
          %v1505 = vsub.f32 %v819, %v1489
          %v1506 = vsub.f32 %v820, %v1490
          %v1507 = vsub.f32 %v821, %v1491
          %v1508 = vsub.f32 %v822, %v1492
          %v1509 = vsub.f32 %v823, %v1493
          %v1510 = vsub.f32 %v824, %v1494
          %v1511 = vsub.f32 %v825, %v1495
          %v1512 = vsub.f32 %v826, %v1496
          %v1513 = vsub.f32 %v827, %v1497
          %v1514 = vsub.f32 %v828, %v1498
          %v1515 = vsub.f32 %v829, %v1499
          %v1516 = vsub.f32 %v830, %v1500
          %v1517 = vsub.f32 %v831, %v1501
          %v1518 = vsub.f32 %v832, %v1502
          %v1519 = vsub.f32 %v833, %v1503
          %v1520 = vsub.f32 %v834, %v1504
          %v1521 = vmul.f32 %v1505, 0.003921569
          %v1522 = vmul.f32 %v1506, 0.003921569
          %v1523 = vmul.f32 %v1507, 0.003921569
          %v1524 = vmul.f32 %v1508, 0.003921569
          %v1525 = vmul.f32 %v1509, 0.003921569
          %v1526 = vmul.f32 %v1510, 0.003921569
          %v1527 = vmul.f32 %v1511, 0.003921569
          %v1528 = vmul.f32 %v1512, 0.003921569
          %v1529 = vmul.f32 %v1513, 0.003921569
          %v1530 = vmul.f32 %v1514, 0.003921569
          %v1531 = vmul.f32 %v1515, 0.003921569
          %v1532 = vmul.f32 %v1516, 0.003921569
          %v1533 = vmul.f32 %v1517, 0.003921569
          %v1534 = vmul.f32 %v1518, 0.003921569
          %v1535 = vmul.f32 %v1519, 0.003921569
          %v1536 = vmul.f32 %v1520, 0.003921569
          %v1537 = vmul.f32 %v1411, 32.0
          %v1538 = vmul.f32 %v1416, 32.0
          %v1539 = vmul.f32 %v1421, 32.0
          %v1540 = vmul.f32 %v1426, 32.0
          %v1541 = vmul.f32 %v1431, 32.0
          %v1542 = vmul.f32 %v1436, 32.0
          %v1543 = vmul.f32 %v1441, 32.0
          %v1544 = vmul.f32 %v1446, 32.0
          %v1545 = vmul.f32 %v1451, 32.0
          %v1546 = vmul.f32 %v1456, 32.0
          %v1547 = vmul.f32 %v1461, 32.0
          %v1548 = vmul.f32 %v1466, 32.0
          %v1549 = vmul.f32 %v1471, 32.0
          %v1550 = vmul.f32 %v1476, 32.0
          %v1551 = vmul.f32 %v1481, 32.0
          %v1552 = vmul.f32 %v1486, 32.0
          %v1553 = vsub.f32 %v835, %v1537
          %v1554 = vsub.f32 %v836, %v1538
          %v1555 = vsub.f32 %v837, %v1539
          %v1556 = vsub.f32 %v838, %v1540
          %v1557 = vsub.f32 %v839, %v1541
          %v1558 = vsub.f32 %v840, %v1542
          %v1559 = vsub.f32 %v841, %v1543
          %v1560 = vsub.f32 %v842, %v1544
          %v1561 = vsub.f32 %v843, %v1545
          %v1562 = vsub.f32 %v844, %v1546
          %v1563 = vsub.f32 %v845, %v1547
          %v1564 = vsub.f32 %v846, %v1548
          %v1565 = vsub.f32 %v847, %v1549
          %v1566 = vsub.f32 %v848, %v1550
          %v1567 = vsub.f32 %v849, %v1551
          %v1568 = vsub.f32 %v850, %v1552
          %v1569 = vmul.f32 %v1553, 0.003921569
          %v1570 = vmul.f32 %v1554, 0.003921569
          %v1571 = vmul.f32 %v1555, 0.003921569
          %v1572 = vmul.f32 %v1556, 0.003921569
          %v1573 = vmul.f32 %v1557, 0.003921569
          %v1574 = vmul.f32 %v1558, 0.003921569
          %v1575 = vmul.f32 %v1559, 0.003921569
          %v1576 = vmul.f32 %v1560, 0.003921569
          %v1577 = vmul.f32 %v1561, 0.003921569
          %v1578 = vmul.f32 %v1562, 0.003921569
          %v1579 = vmul.f32 %v1563, 0.003921569
          %v1580 = vmul.f32 %v1564, 0.003921569
          %v1581 = vmul.f32 %v1565, 0.003921569
          %v1582 = vmul.f32 %v1566, 0.003921569
          %v1583 = vmul.f32 %v1567, 0.003921569
          %v1584 = vmul.f32 %v1568, 0.003921569
          %v1585 = vmul.f32 %v1521, %v1521
          %v1586 = vmul.f32 %v1522, %v1522
          %v1587 = vmul.f32 %v1523, %v1523
          %v1588 = vmul.f32 %v1524, %v1524
          %v1589 = vmul.f32 %v1525, %v1525
          %v1590 = vmul.f32 %v1526, %v1526
          %v1591 = vmul.f32 %v1527, %v1527
          %v1592 = vmul.f32 %v1528, %v1528
          %v1593 = vmul.f32 %v1529, %v1529
          %v1594 = vmul.f32 %v1530, %v1530
          %v1595 = vmul.f32 %v1531, %v1531
          %v1596 = vmul.f32 %v1532, %v1532
          %v1597 = vmul.f32 %v1533, %v1533
          %v1598 = vmul.f32 %v1534, %v1534
          %v1599 = vmul.f32 %v1535, %v1535
          %v1600 = vmul.f32 %v1536, %v1536
          %v1601 = vadd.f32 %v1585, %v1586
          %v1602 = vadd.f32 %v1601, %v1587
          %v1603 = vadd.f32 %v1602, %v1588
          %v1604 = vadd.f32 %v1603, %v1589
          %v1605 = vadd.f32 %v1604, %v1590
          %v1606 = vadd.f32 %v1605, %v1591
          %v1607 = vadd.f32 %v1606, %v1592
          %v1608 = vadd.f32 %v1607, %v1593
          %v1609 = vadd.f32 %v1608, %v1594
          %v1610 = vadd.f32 %v1609, %v1595
          %v1611 = vadd.f32 %v1610, %v1596
          %v1612 = vadd.f32 %v1611, %v1597
          %v1613 = vadd.f32 %v1612, %v1598
          %v1614 = vadd.f32 %v1613, %v1599
          %v1615 = vadd.f32 %v1614, %v1600
          %1616 = vadd.xlane.f32.xlu0 %v1615
          %v1617 = vpop.xlane.xlu0 %1616
          %v1618 = vrot.slane %v1617, 4
          %v1619 = vadd.f32 %v1617, %v1618
          %v1620 = vrot.slane %v1619, 2
          %v1621 = vadd.f32 %v1619, %v1620
          %v1622 = vrot.slane %v1621, 1
          %v1623 = vadd.f32 %v1621, %v1622
          %s1624 = vtos %v1623
          %v1625 = vmul.f32 %v968, %v968
          %v1626 = vsel %vm973, %v1625, 0.0
          %1627 = vadd.xlane.f32.xlu0 %v1626
          %v1628 = vpop.xlane.xlu0 %1627
          %v1629 = vrot.slane %v1628, 4
          %v1630 = vadd.f32 %v1628, %v1629
          %v1631 = vrot.slane %v1630, 2
          %v1632 = vadd.f32 %v1630, %v1631
          %v1633 = vrot.slane %v1632, 1
          %v1634 = vadd.f32 %v1632, %v1633
          %s1635 = vtos %v1634
          %s1636 = ssub.f32 %s1624, %s1635
          %v1637 = vmul.f32 %v1569, %v1569
          %v1638 = vmul.f32 %v1570, %v1570
          %v1639 = vmul.f32 %v1571, %v1571
          %v1640 = vmul.f32 %v1572, %v1572
          %v1641 = vmul.f32 %v1573, %v1573
          %v1642 = vmul.f32 %v1574, %v1574
          %v1643 = vmul.f32 %v1575, %v1575
          %v1644 = vmul.f32 %v1576, %v1576
          %v1645 = vmul.f32 %v1577, %v1577
          %v1646 = vmul.f32 %v1578, %v1578
          %v1647 = vmul.f32 %v1579, %v1579
          %v1648 = vmul.f32 %v1580, %v1580
          %v1649 = vmul.f32 %v1581, %v1581
          %v1650 = vmul.f32 %v1582, %v1582
          %v1651 = vmul.f32 %v1583, %v1583
          %v1652 = vmul.f32 %v1584, %v1584
          %v1653 = vadd.f32 %v1637, %v1638
          %v1654 = vadd.f32 %v1653, %v1639
          %v1655 = vadd.f32 %v1654, %v1640
          %v1656 = vadd.f32 %v1655, %v1641
          %v1657 = vadd.f32 %v1656, %v1642
          %v1658 = vadd.f32 %v1657, %v1643
          %v1659 = vadd.f32 %v1658, %v1644
          %v1660 = vadd.f32 %v1659, %v1645
          %v1661 = vadd.f32 %v1660, %v1646
          %v1662 = vadd.f32 %v1661, %v1647
          %v1663 = vadd.f32 %v1662, %v1648
          %v1664 = vadd.f32 %v1663, %v1649
          %v1665 = vadd.f32 %v1664, %v1650
          %v1666 = vadd.f32 %v1665, %v1651
          %v1667 = vadd.f32 %v1666, %v1652
          %1668 = vadd.xlane.f32.xlu0 %v1667
          %v1669 = vpop.xlane.xlu0 %1668
          %v1670 = vrot.slane %v1669, 4
          %v1671 = vadd.f32 %v1669, %v1670
          %v1672 = vrot.slane %v1671, 2
          %v1673 = vadd.f32 %v1671, %v1672
          %v1674 = vrot.slane %v1673, 1
          %v1675 = vadd.f32 %v1673, %v1674
          %s1676 = vtos %v1675
          %s1677 = sadd.f32 %s1636, %s1676
          %v1678 = vmul.f32 %v972, %v972
          %v1679 = vsel %vm973, %v1678, 0.0
          %1680 = vadd.xlane.f32.xlu0 %v1679
          %v1681 = vpop.xlane.xlu0 %1680
          %v1682 = vrot.slane %v1681, 4
          %v1683 = vadd.f32 %v1681, %v1682
          %v1684 = vrot.slane %v1683, 2
          %v1685 = vadd.f32 %v1683, %v1684
          %v1686 = vrot.slane %v1685, 1
          %v1687 = vadd.f32 %v1685, %v1686
          %s1688 = vtos %v1687
          %s1689 = ssub.f32 %s1677, %s1688
          %s1690 = smul.f32 %s1689, 0.010416667
          %s1691 = smul.f32 %s984, 25.0
          %s1692 = smul.f32 %s1029, 50.0
          %s1693 = sadd.f32 %s1691, %s1692
          %s1694 = sadd.f32 %s1693, %s1690
          %v1695 = vstv %s1694
          %1696 = vst [vmem:[#allocation10] sm:$0xff] %v1695
        $region44: #{tpu_custom_call.1} parent=27 // pred_fallthru
          _
        // Predicated region
        $region45: #{tpu_custom_call.1} parent=27 // pred_check
          %p1697 = pneg %p85
        $region46: #{tpu_custom_call.1} parent=27 // pred_check_branch
          %1699 = sbr.rel (%p1697) target = $region48
        $region47: #{tpu_custom_call.1} parent=27 // pred_region
          %s1701 = ssub.s32 128, 128
          %1702 = vsyncadd [#allocation7], %s1701
          %s1704 = sshll.u32 [#allocation10], 4
          %s1705 = int_to_ptr.vmem [resolvable:$true] %s1704
          %1707 = dma.vmem_to_hbm [thread:$0]  %s1705, 128, %s2, [#allocation7]
        $region48: #{tpu_custom_call.1} parent=27 // pred_fallthru
          _
        // Predicated region
        $region49: #{tpu_custom_call.1} parent=27 // pred_check
          %p1708 = pneg %p85
        $region50: #{tpu_custom_call.1} parent=27 // pred_check_branch
          %1710 = sbr.rel (%p1708) target = $region52
        $region51: #{tpu_custom_call.1} parent=27 // pred_region
          %1711 = dma.done [#allocation7], 128
        $region52: #{tpu_custom_call.1} parent=27 // pred_fallthru
          _
      $region28: #{tpu_custom_call.1} parent=5 // pred_fallthru
        _
      %p1712 = scmp.le.s32.totalorder 2, %s15
      // Predicated region
      $region53: #{tpu_custom_call.1} parent=5 // pred_check
        %p1713 = pneg %p1712
      $region54: #{tpu_custom_call.1} parent=5 // pred_check_branch
        %1715 = sbr.rel (%p1713) target = $region56
      $region55: #{tpu_custom_call.1} parent=5 // pred_region
        %s1716 = ssub.s32 %s15, 2
      $region56: #{tpu_custom_call.1} parent=5 // pred_fallthru
        _
    $region6: #{tpu_custom_call.1} parent=1 // loop_footer
      %s19 = sadd.s32 1, %s15
    $region7: #{tpu_custom_call.1} parent=1 // loop_footer_branch
      %14 = sbr.rel target = $region3
    $region8: #{tpu_custom_call.1} parent=1 // loop_exit
      _
    %1717 = vsyncpa [#allocation6], 1
    %s1718 = scalar_lea.sflag [#allocation6], 1
    %1719 = vsyncpa %s1718, 1
    %1720 = vsyncpa [#allocation9], 1
    %s1721 = scalar_lea.sflag [#allocation9], 1
    %1722 = vsyncpa %s1721, 1
    %1723 = vsyncpa [#allocation7], 1
    %s1724 = scalar_lea.sflag [#allocation7], 1
    %1725 = vsyncpa %s1724, 1

</llo_original>
